<compile_context>
chip_gen: v7x
topology: tpu7x:2x2x1
jax: 0.10.0
libtpu: 0.0.40
codegen_flags: <defaults>
</compile_context>

<pallas_src>
import jax
import jax.numpy as jnp
from jax.experimental import pallas as pl
from jax.experimental.pallas import tpu as pltpu


def _coord_reg_kernel(x_ref, w_ref, gx_ref, gy_ref, hm_ref, coord_ref):
    # x_ref    : (1, C, T, HW)  all T slices of one sample, channels leading
    # w_ref    : (L, C)         1x1x1 conv weight (bias=False)
    # gx_ref   : (1, HW)        normalized x coordinate per flattened pixel
    # gy_ref   : (1, HW)        normalized y coordinate per flattened pixel
    # hm_ref   : (1, T, L, HW)  softmaxed heatmaps (flattened spatial)
    # coord_ref: (1, T, L, 2)   expected (x, y) coordinates
    x = x_ref[0]                   # (C, T, HW)
    w = w_ref[...]                 # (L, C)
    C = x.shape[0]

    # Pointwise conv as C broadcast multiply-adds on the VPU, emitted directly
    # in (T, L, HW) layout (lane dim = HW); MXU with K=C would be ~all padding.
    logits = w[:, 0:1][None, :, :] * x[0][:, None, :]            # (T, L, HW)
    for c in range(1, C):
        logits = logits + w[:, c:c + 1][None, :, :] * x[c][:, None, :]

    # flat_softmax over the flattened spatial axis (lane reduction on XLU).
    m = jnp.max(logits, axis=-1, keepdims=True)                  # (T, L, 1)
    e = jnp.exp(logits - m)                                      # (T, L, HW)
    s = jnp.sum(e, axis=-1, keepdims=True)                       # (T, L, 1)
    inv = pl.reciprocal(s)                                       # exact 1/s
    hm_ref[0] = e * inv                                          # (T, L, HW)

    # dsnt: expectation of normalized coordinates under the heatmap, computed
    # from the unnormalized exponentials and rescaled by the same reciprocal.
    gx = gx_ref[...][None, :, :]                                 # (1, 1, HW)
    gy = gy_ref[...][None, :, :]                                 # (1, 1, HW)
    ex = jnp.sum(e * gx, axis=-1, keepdims=True) * inv           # (T, L, 1)
    ey = jnp.sum(e * gy, axis=-1, keepdims=True) * inv           # (T, L, 1)
    coord_ref[0] = jnp.concatenate([ex, ey], axis=-1)            # (T, L, 2)


def coord_regression_forward(h, conv_weight):
    """h: (N, C, T, H, W) float32; conv_weight: (L, C, 1, 1, 1) float32."""
    N, C, T, H, W = h.shape
    L = conv_weight.shape[0]
    HW = H * W

    w2d = conv_weight.reshape(L, C)
    # Free, contiguous reshape -- no HBM transpose; BlockSpec picks the sample.
    x = h.reshape(N, C, T, HW)

    # dsntnn.normalized_linspace: cell-centred coords in (-1, 1).
    # Flattened row-major over (H, W): p = h*W + w -> x = xs[p % W], y = ys[p // W]
    xs = (2.0 * jnp.arange(W, dtype=jnp.float32) + 1.0) / W - 1.0   # (W,)
    ys = (2.0 * jnp.arange(H, dtype=jnp.float32) + 1.0) / H - 1.0   # (H,)
    gx = jnp.tile(xs, H).reshape(1, HW)                             # (1, HW)
    gy = jnp.repeat(ys, W).reshape(1, HW)                           # (1, HW)

    hm_flat, coords = pl.pallas_call(
        _coord_reg_kernel,
        out_shape=(
            jax.ShapeDtypeStruct((N, T, L, HW), jnp.float32),
            jax.ShapeDtypeStruct((N, T, L, 2), jnp.float32),
        ),
        grid_spec=pl.GridSpec(
            grid=(N,),
            in_specs=[
                pl.BlockSpec((1, C, T, HW), lambda n: (n, 0, 0, 0)),
                pl.BlockSpec((L, C), lambda n: (0, 0)),
                pl.BlockSpec((1, HW), lambda n: (0, 0)),
                pl.BlockSpec((1, HW), lambda n: (0, 0)),
            ],
            out_specs=(
                pl.BlockSpec((1, T, L, HW), lambda n: (n, 0, 0, 0)),
                pl.BlockSpec((1, T, L, 2), lambda n: (n, 0, 0, 0)),
            ),
        ),
        compiler_params=pltpu.CompilerParams(
            dimension_semantics=("parallel",),
            vmem_limit_bytes=32 * 1024 * 1024,
        ),
    )(x, w2d, gx, gy)

    heatmaps = hm_flat.reshape(N, T, L, H, W)
    return coords, heatmaps


def _reference_forward(h, conv_weight):
    """Pure-JAX reference mirroring the PyTorch semantics."""
    N, C, T, H, W = h.shape
    L = conv_weight.shape[0]
    w2d = conv_weight.reshape(L, C)
    # conv3d 1x1x1: (N, L, T, H, W)
    uhm = jnp.einsum("nctHW,lc->nltHW", h, w2d,
                     precision=jax.lax.Precision.HIGHEST)
    # transpose_(2,1).transpose_(1,0) -> iterate over T; stack back on dim 1
    uhm = jnp.transpose(uhm, (0, 2, 1, 3, 4))        # (N, T, L, H, W)
    flat = uhm.reshape(N, T, L, H * W)
    flat = jax.nn.softmax(flat, axis=-1)
    xs = (2.0 * jnp.arange(W, dtype=jnp.float32) + 1.0) / W - 1.0
    ys = (2.0 * jnp.arange(H, dtype=jnp.float32) + 1.0) / H - 1.0
    hm = flat.reshape(N, T, L, H, W)
    ex = jnp.sum(hm * xs[None, None, None, None, :], axis=(-2, -1))
    ey = jnp.sum(hm * ys[None, None, None, :, None], axis=(-2, -1))
    coords = jnp.stack([ex, ey], axis=-1)            # (N, T, L, 2)
    return coords, hm


if __name__ == "__main__":
    # small shapes: N=2, C_in=4, T=8, H=W=16, n_locations=16
    N, C, T, H, W, L = 2, 4, 8, 16, 16, 16

    key = jax.random.PRNGKey(0)
    k_h, k_w = jax.random.split(key)
    h = jax.random.normal(k_h, (N, C, T, H, W), dtype=jnp.float32)
    # Conv3d(input_filters, n_locations, kernel_size=1, bias=False) weight
    conv_weight = jax.random.normal(k_w, (L, C, 1, 1, 1), dtype=jnp.float32) * 0.1

    coords, heatmaps = coord_regression_forward(h, conv_weight)
    coords = jax.block_until_ready(coords)
    heatmaps = jax.block_until_ready(heatmaps)

    ref_coords, ref_heatmaps = _reference_forward(h, conv_weight)
    assert coords.shape == (N, T, L, 2)
    assert heatmaps.shape == (N, T, L, H, W)
    assert jnp.allclose(coords, ref_coords, atol=1e-5, rtol=1e-5)
    assert jnp.allclose(heatmaps, ref_heatmaps, atol=1e-5, rtol=1e-5)

    print("KERNEL_OK")
</pallas_src>

<mosaic_0001>
module attributes {stable_mosaic.version = 11 : i64} {
  func.func @_coord_reg_kernel(%arg0: i32, %arg1: memref<1x4x8x256xf32, #tpu.memory_space<vmem>>, %arg2: memref<16x4xf32, #tpu.memory_space<vmem>>, %arg3: memref<1x256xf32, #tpu.memory_space<vmem>>, %arg4: memref<1x256xf32, #tpu.memory_space<vmem>>, %arg5: memref<1x8x16x256xf32, #tpu.memory_space<vmem>>, %arg6: memref<1x8x16x2xf32, #tpu.memory_space<vmem>>) attributes {dimension_semantics = [#tpu.dimension_semantics<parallel>], iteration_bounds = array<i64: 2>, scalar_prefetch = 0 : i64, scratch_operands = 0 : i64, tpu.core_type = #tpu.core_type<tc>, window_params = [{transform_indices = @transform_0, window_bounds = array<i64: 1, 4, 8, 256>}, {pipeline_mode = #tpu.pipeline_mode<synchronous>, transform_indices = @transform_1, window_bounds = array<i64: 16, 4>}, {pipeline_mode = #tpu.pipeline_mode<synchronous>, transform_indices = @transform_2, window_bounds = array<i64: 1, 256>}, {pipeline_mode = #tpu.pipeline_mode<synchronous>, transform_indices = @transform_3, window_bounds = array<i64: 1, 256>}, {transform_indices = @transform_4, window_bounds = array<i64: 1, 8, 16, 256>}, {transform_indices = @transform_5, window_bounds = array<i64: 1, 8, 16, 2>}]} {
    %c0 = arith.constant 0 : index
    %c0_0 = arith.constant 0 : index
    %c0_1 = arith.constant 0 : index
    %c0_2 = arith.constant 0 : index
    %0 = vector.load %arg1[%c0, %c0_0, %c0_1, %c0_2] : memref<1x4x8x256xf32, #tpu.memory_space<vmem>>, vector<1x4x8x256xf32>
    %1 = vector.shape_cast %0 : vector<1x4x8x256xf32> to vector<4x8x256xf32>
    %c0_3 = arith.constant 0 : index
    %c0_4 = arith.constant 0 : index
    %2 = vector.load %arg2[%c0_3, %c0_4] : memref<16x4xf32, #tpu.memory_space<vmem>>, vector<16x4xf32>
    %3 = vector.extract_strided_slice %2 {offsets = [0, 0], sizes = [16, 1], strides = [1, 1]} : vector<16x4xf32> to vector<16x1xf32>
    %4 = vector.shape_cast %3 : vector<16x1xf32> to vector<1x16x1xf32>
    %5 = vector.extract_strided_slice %1 {offsets = [0, 0, 0], sizes = [1, 8, 256], strides = [1, 1, 1]} : vector<4x8x256xf32> to vector<1x8x256xf32>
    %6 = vector.shape_cast %5 : vector<1x8x256xf32> to vector<8x256xf32>
    %7 = vector.shape_cast %6 : vector<8x256xf32> to vector<8x1x256xf32>
    %8 = vector.broadcast %4 : vector<1x16x1xf32> to vector<8x16x256xf32>
    %9 = vector.broadcast %7 : vector<8x1x256xf32> to vector<8x16x256xf32>
    %10 = arith.mulf %8, %9 : vector<8x16x256xf32>
    %11 = vector.extract_strided_slice %2 {offsets = [0, 1], sizes = [16, 1], strides = [1, 1]} : vector<16x4xf32> to vector<16x1xf32>
    %12 = vector.shape_cast %11 : vector<16x1xf32> to vector<1x16x1xf32>
    %13 = vector.extract_strided_slice %1 {offsets = [1, 0, 0], sizes = [1, 8, 256], strides = [1, 1, 1]} : vector<4x8x256xf32> to vector<1x8x256xf32>
    %14 = vector.shape_cast %13 : vector<1x8x256xf32> to vector<8x256xf32>
    %15 = vector.shape_cast %14 : vector<8x256xf32> to vector<8x1x256xf32>
    %16 = vector.broadcast %12 : vector<1x16x1xf32> to vector<8x16x256xf32>
    %17 = vector.broadcast %15 : vector<8x1x256xf32> to vector<8x16x256xf32>
    %18 = arith.mulf %16, %17 : vector<8x16x256xf32>
    %19 = arith.addf %10, %18 : vector<8x16x256xf32>
    %20 = vector.extract_strided_slice %2 {offsets = [0, 2], sizes = [16, 1], strides = [1, 1]} : vector<16x4xf32> to vector<16x1xf32>
    %21 = vector.shape_cast %20 : vector<16x1xf32> to vector<1x16x1xf32>
    %22 = vector.extract_strided_slice %1 {offsets = [2, 0, 0], sizes = [1, 8, 256], strides = [1, 1, 1]} : vector<4x8x256xf32> to vector<1x8x256xf32>
    %23 = vector.shape_cast %22 : vector<1x8x256xf32> to vector<8x256xf32>
    %24 = vector.shape_cast %23 : vector<8x256xf32> to vector<8x1x256xf32>
    %25 = vector.broadcast %21 : vector<1x16x1xf32> to vector<8x16x256xf32>
    %26 = vector.broadcast %24 : vector<8x1x256xf32> to vector<8x16x256xf32>
    %27 = arith.mulf %25, %26 : vector<8x16x256xf32>
    %28 = arith.addf %19, %27 : vector<8x16x256xf32>
    %29 = vector.extract_strided_slice %2 {offsets = [0, 3], sizes = [16, 1], strides = [1, 1]} : vector<16x4xf32> to vector<16x1xf32>
    %30 = vector.shape_cast %29 : vector<16x1xf32> to vector<1x16x1xf32>
    %31 = vector.extract_strided_slice %1 {offsets = [3, 0, 0], sizes = [1, 8, 256], strides = [1, 1, 1]} : vector<4x8x256xf32> to vector<1x8x256xf32>
    %32 = vector.shape_cast %31 : vector<1x8x256xf32> to vector<8x256xf32>
    %33 = vector.shape_cast %32 : vector<8x256xf32> to vector<8x1x256xf32>
    %34 = vector.broadcast %30 : vector<1x16x1xf32> to vector<8x16x256xf32>
    %35 = vector.broadcast %33 : vector<8x1x256xf32> to vector<8x16x256xf32>
    %36 = arith.mulf %34, %35 : vector<8x16x256xf32>
    %37 = arith.addf %28, %36 : vector<8x16x256xf32>
    %cst = arith.constant dense<0xFF800000> : vector<8x16xf32>
    %38 = vector.multi_reduction <maximumf>, %37, %cst [2] : vector<8x16x256xf32> to vector<8x16xf32>
    %39 = vector.shape_cast %38 : vector<8x16xf32> to vector<8x16x1xf32>
    %40 = vector.broadcast %39 : vector<8x16x1xf32> to vector<8x16x256xf32>
    %41 = arith.subf %37, %40 : vector<8x16x256xf32>
    %42 = math.exp %41 : vector<8x16x256xf32>
    %cst_5 = arith.constant dense<0.000000e+00> : vector<8x16xf32>
    %43 = vector.multi_reduction <add>, %42, %cst_5 [2] : vector<8x16x256xf32> to vector<8x16xf32>
    %44 = vector.shape_cast %43 : vector<8x16xf32> to vector<8x16x1xf32>
    %45 = tpu.reciprocal %44 : vector<8x16x1xf32> -> vector<8x16x1xf32>
    %46 = vector.broadcast %45 : vector<8x16x1xf32> to vector<8x16x256xf32>
    %47 = arith.mulf %42, %46 : vector<8x16x256xf32>
    %c0_6 = arith.constant 0 : index
    %c0_7 = arith.constant 0 : index
    %c0_8 = arith.constant 0 : index
    %c0_9 = arith.constant 0 : index
    %48 = vector.load %arg5[%c0_6, %c0_7, %c0_8, %c0_9] : memref<1x8x16x256xf32, #tpu.memory_space<vmem>>, vector<1x8x16x256xf32>
    %49 = vector.shape_cast %48 : vector<1x8x16x256xf32> to vector<8x16x256xf32>
    %50 = vector.shape_cast %47 : vector<8x16x256xf32> to vector<1x8x16x256xf32>
    tpu.vector_store %arg5[%c0_6, %c0_7, %c0_8, %c0_9], %50 {strides = array<i32>} : memref<1x8x16x256xf32, #tpu.memory_space<vmem>>, vector<1x8x16x256xf32>,
    %c0_10 = arith.constant 0 : index
    %c0_11 = arith.constant 0 : index
    %51 = vector.load %arg3[%c0_10, %c0_11] : memref<1x256xf32, #tpu.memory_space<vmem>>, vector<1x256xf32>
    %52 = vector.shape_cast %51 : vector<1x256xf32> to vector<1x1x256xf32>
    %c0_12 = arith.constant 0 : index
    %c0_13 = arith.constant 0 : index
    %53 = vector.load %arg4[%c0_12, %c0_13] : memref<1x256xf32, #tpu.memory_space<vmem>>, vector<1x256xf32>
    %54 = vector.shape_cast %53 : vector<1x256xf32> to vector<1x1x256xf32>
    %55 = vector.broadcast %52 : vector<1x1x256xf32> to vector<8x16x256xf32>
    %56 = arith.mulf %42, %55 : vector<8x16x256xf32>
    %cst_14 = arith.constant dense<0.000000e+00> : vector<8x16xf32>
    %57 = vector.multi_reduction <add>, %56, %cst_14 [2] : vector<8x16x256xf32> to vector<8x16xf32>
    %58 = vector.shape_cast %57 : vector<8x16xf32> to vector<8x16x1xf32>
    %59 = arith.mulf %58, %45 : vector<8x16x1xf32>
    %60 = vector.broadcast %54 : vector<1x1x256xf32> to vector<8x16x256xf32>
    %61 = arith.mulf %42, %60 : vector<8x16x256xf32>
    %cst_15 = arith.constant dense<0.000000e+00> : vector<8x16xf32>
    %62 = vector.multi_reduction <add>, %61, %cst_15 [2] : vector<8x16x256xf32> to vector<8x16xf32>
    %63 = vector.shape_cast %62 : vector<8x16xf32> to vector<8x16x1xf32>
    %64 = arith.mulf %63, %45 : vector<8x16x1xf32>
    %65 = tpu.concatenate %59, %64 in 2 : vector<8x16x1xf32>, vector<8x16x1xf32> -> vector<8x16x2xf32>
    %c0_16 = arith.constant 0 : index
    %c0_17 = arith.constant 0 : index
    %c0_18 = arith.constant 0 : index
    %c0_19 = arith.constant 0 : index
    %66 = vector.load %arg6[%c0_16, %c0_17, %c0_18, %c0_19] : memref<1x8x16x2xf32, #tpu.memory_space<vmem>>, vector<1x8x16x2xf32>
    %67 = vector.shape_cast %66 : vector<1x8x16x2xf32> to vector<8x16x2xf32>
    %68 = vector.shape_cast %65 : vector<8x16x2xf32> to vector<1x8x16x2xf32>
    tpu.vector_store %arg6[%c0_16, %c0_17, %c0_18, %c0_19], %68 {strides = array<i32>} : memref<1x8x16x2xf32, #tpu.memory_space<vmem>>, vector<1x8x16x2xf32>,
    return
  }
  func.func @transform_0(%arg0: i32) -> (i32, i32, i32, i32) {
    %c0_i32 = arith.constant 0 : i32
    %c0_i32_0 = arith.constant 0 : i32
    %c0_i32_1 = arith.constant 0 : i32
    %c0_i32_2 = arith.constant 0 : i32
    return %arg0, %c0_i32, %c0_i32_0, %c0_i32_1 : i32, i32, i32, i32
  }
  func.func @transform_1(%arg0: i32) -> (i32, i32) {
    %c0_i32 = arith.constant 0 : i32
    %c0_i32_0 = arith.constant 0 : i32
    %c0_i32_1 = arith.constant 0 : i32
    return %c0_i32, %c0_i32_0 : i32, i32
  }
  func.func @transform_2(%arg0: i32) -> (i32, i32) {
    %c0_i32 = arith.constant 0 : i32
    %c0_i32_0 = arith.constant 0 : i32
    %c0_i32_1 = arith.constant 0 : i32
    return %c0_i32, %c0_i32_0 : i32, i32
  }
  func.func @transform_3(%arg0: i32) -> (i32, i32) {
    %c0_i32 = arith.constant 0 : i32
    %c0_i32_0 = arith.constant 0 : i32
    %c0_i32_1 = arith.constant 0 : i32
    return %c0_i32, %c0_i32_0 : i32, i32
  }
  func.func @transform_4(%arg0: i32) -> (i32, i32, i32, i32) {
    %c0_i32 = arith.constant 0 : i32
    %c0_i32_0 = arith.constant 0 : i32
    %c0_i32_1 = arith.constant 0 : i32
    %c0_i32_2 = arith.constant 0 : i32
    return %arg0, %c0_i32, %c0_i32_0, %c0_i32_1 : i32, i32, i32, i32
  }
  func.func @transform_5(%arg0: i32) -> (i32, i32, i32, i32) {
    %c0_i32 = arith.constant 0 : i32
    %c0_i32_0 = arith.constant 0 : i32
    %c0_i32_1 = arith.constant 0 : i32
    %c0_i32_2 = arith.constant 0 : i32
    return %arg0, %c0_i32, %c0_i32_0, %c0_i32_1 : i32, i32, i32, i32
  }
}

</mosaic_0001>

<llo_original>
// kernel: tpu_custom_call.1
$region0: #{tpu_custom_call.1}
  #allocation0 [shape = 'u32[]', space=smem, size = 0x4, offset = 0x4, fixed_abs, tag = 'smem constant byte address 0x4 - core index']
  #allocation1 [shape = 'u32[144,128]{1,0:T(1,128)}', space=vmem, size = 0x12000, scoped, tag = 'internal scratch']
  %s0 = inlined_call_operand.hbm [shape: f32[2,4,8,256], index: 0, kind: input, shape index: {}]
  %s1 = inlined_call_operand.vmem [shape: f32[16,4], index: 1, kind: input, shape index: {}]
  %s2 = inlined_call_operand.vmem [shape: f32[1,256], index: 2, kind: input, shape index: {}]
  %s3 = inlined_call_operand.vmem [shape: f32[1,256], index: 3, kind: input, shape index: {}]
  %s4 = inlined_call_operand.hbm [shape: f32[2,8,16,256], index: 4, kind: output, shape index: {0}]
  %s5 = inlined_call_operand.vmem [shape: f32[2,8,16,2], index: 5, kind: output, shape index: {1}]
  %6 = xla_tuple %s4, %s5
  %s7 = sld [smem:[#allocation0]]
  $region61: #{tpu_custom_call.1} parent=0
    _
  %s9 = ssub.s32 1, %s7
  %s10 = scalar_select 0, %s9, %s7
  $region1: #{tpu_custom_call.1} parent=0
    #allocation2 [shape = 'u8[65536]{0}', space=vmem, size = 0x10000, scoped, tag = 'input window, operand 0']
    #allocation3 [shape = 's32[2]{0}', space=sflag, size = 0x8, scoped, tag = 'scoped memory for tpu_custom_call.1']
    #allocation4 [shape = 's32[2]{0}', space=sflag, size = 0x8, scoped, tag = 'scoped memory for tpu_custom_call.1']
    #allocation5 [shape = 'u8[262144]{0}', space=vmem, size = 0x40000, scoped, tag = 'output window, operand 0']
    %11 = vsyncpa [#allocation3], 0
    %s12 = scalar_lea.sflag [#allocation3], 1
    %13 = vsyncpa %s12, 0
    %14 = vsyncpa [#allocation4], 0
    %s15 = scalar_lea.sflag [#allocation4], 1
    %16 = vsyncpa %s15, 0
    loop: start=0, step=1, limit=4
    $region2: #{tpu_custom_call.1} parent=1 // loop_pre_header
      _
    $region3: #{tpu_custom_call.1} parent=1 // loop_header
      %s18 = sphi 0, %s22
      %p19 = scmp.ge.s32.totalorder %s18, 4
      %s28 = sphi 0, %s30
      %s31 = sphi 0, %s28
      %s32 = sphi 0, %s31
      %s48 = sphi 0, %s32
      %s52 = sphi 0, %s52
      %s54 = sphi 0, %s52
      %s55 = sphi 0, %s54
      %s69 = sphi 0, %s55
      %s73 = sphi 0, %s73
      %s75 = sphi 0, %s73
      %s76 = sphi 0, %s75
      %s90 = sphi 0, %s76
      %s94 = sphi 0, %s94
      %s96 = sphi 0, %s94
      %s97 = sphi 0, %s96
      %s111 = sphi 0, %s97
      %s117 = sphi 0, %s119
      %s120 = sphi 0, %s117
      %s121 = sphi 0, %s120
      %s137 = sphi 0, %s121
      %s143 = sphi 0, %s145
      %s146 = sphi 0, %s143
      %s147 = sphi 0, %s146
      %s163 = sphi 0, %s147
    $region4: #{tpu_custom_call.1} parent=1 // loop_header_branch
      %21 = sbr.rel (%p19) target = $region8
    $region5: #{tpu_custom_call.1} parent=1 // loop_body
      %s23 = ssub.s32 %s18, 1
      %s24 = ssub.s32 %s18, 2
      %s25 = sadd.s32 %s18, 1
      %s26 = ssub.s32 %s18, %s25
      %p27 = scmp.eq.s32.totalorder %s26, 0
      %s29 = sadd.s32 %s28, 1
      %s30 = scalar_select %p27, %s28, %s29
      %p33 = pneg %p27
      %p34 = scmp.eq.s32.totalorder %s18, 1
      %p35 = por %p33, %p34
      %p36 = scmp.ne.s32.totalorder %s28, %s31
      %p37 = scmp.eq.s32.totalorder %s18, 0
      %p38 = por %p36, %p37
      %p39 = scmp.ne.s32.totalorder %s28, %s31
      %p40 = scmp.eq.s32.totalorder %s23, 1
      %p41 = por %p39, %p40
      %p42 = scmp.ne.s32.totalorder %s31, %s32
      %p43 = scmp.eq.s32.totalorder %s23, 0
      %p44 = por %p42, %p43
      %p45 = scmp.ne.s32.totalorder %s31, %s32
      %p46 = scmp.eq.s32.totalorder %s24, 1
      %p47 = por %p45, %p46
      %p49 = scmp.ne.s32.totalorder %s32, %s48
      %p50 = scmp.eq.s32.totalorder %s24, 0
      %p51 = por %p49, %p50
      %s53 = sadd.s32 %s52, 1
      %p56 = scmp.eq.s32.totalorder %s18, 1
      %p57 = scmp.ne.s32.totalorder %s52, %s54
      %p58 = scmp.eq.s32.totalorder %s18, 0
      %p59 = por %p57, %p58
      %p60 = scmp.ne.s32.totalorder %s52, %s54
      %p61 = scmp.eq.s32.totalorder %s23, 1
      %p62 = por %p60, %p61
      %p63 = scmp.ne.s32.totalorder %s54, %s55
      %p64 = scmp.eq.s32.totalorder %s23, 0
      %p65 = por %p63, %p64
      %p66 = scmp.ne.s32.totalorder %s54, %s55
      %p67 = scmp.eq.s32.totalorder %s24, 1
      %p68 = por %p66, %p67
      %p70 = scmp.ne.s32.totalorder %s55, %s69
      %p71 = scmp.eq.s32.totalorder %s24, 0
      %p72 = por %p70, %p71
      %s74 = sadd.s32 %s73, 1
      %p77 = scmp.eq.s32.totalorder %s18, 1
      %p78 = scmp.ne.s32.totalorder %s73, %s75
      %p79 = scmp.eq.s32.totalorder %s18, 0
      %p80 = por %p78, %p79
      %p81 = scmp.ne.s32.totalorder %s73, %s75
      %p82 = scmp.eq.s32.totalorder %s23, 1
      %p83 = por %p81, %p82
      %p84 = scmp.ne.s32.totalorder %s75, %s76
      %p85 = scmp.eq.s32.totalorder %s23, 0
      %p86 = por %p84, %p85
      %p87 = scmp.ne.s32.totalorder %s75, %s76
      %p88 = scmp.eq.s32.totalorder %s24, 1
      %p89 = por %p87, %p88
      %p91 = scmp.ne.s32.totalorder %s76, %s90
      %p92 = scmp.eq.s32.totalorder %s24, 0
      %p93 = por %p91, %p92
      %s95 = sadd.s32 %s94, 1
      %p98 = scmp.eq.s32.totalorder %s18, 1
      %p99 = scmp.ne.s32.totalorder %s94, %s96
      %p100 = scmp.eq.s32.totalorder %s18, 0
      %p101 = por %p99, %p100
      %p102 = scmp.ne.s32.totalorder %s94, %s96
      %p103 = scmp.eq.s32.totalorder %s23, 1
      %p104 = por %p102, %p103
      %p105 = scmp.ne.s32.totalorder %s96, %s97
      %p106 = scmp.eq.s32.totalorder %s23, 0
      %p107 = por %p105, %p106
      %p108 = scmp.ne.s32.totalorder %s96, %s97
      %p109 = scmp.eq.s32.totalorder %s24, 1
      %p110 = por %p108, %p109
      %p112 = scmp.ne.s32.totalorder %s97, %s111
      %p113 = scmp.eq.s32.totalorder %s24, 0
      %p114 = por %p112, %p113
      %s115 = ssub.s32 %s18, %s25
      %p116 = scmp.eq.s32.totalorder %s115, 0
      %s118 = sadd.s32 %s117, 1
      %s119 = scalar_select %p116, %s117, %s118
      %p122 = pneg %p116
      %p123 = scmp.eq.s32.totalorder %s18, 1
      %p124 = por %p122, %p123
      %p125 = scmp.ne.s32.totalorder %s117, %s120
      %p126 = scmp.eq.s32.totalorder %s18, 0
      %p127 = por %p125, %p126
      %p128 = scmp.ne.s32.totalorder %s117, %s120
      %p129 = scmp.eq.s32.totalorder %s23, 1
      %p130 = por %p128, %p129
      %p131 = scmp.ne.s32.totalorder %s120, %s121
      %p132 = scmp.eq.s32.totalorder %s23, 0
      %p133 = por %p131, %p132
      %p134 = scmp.ne.s32.totalorder %s120, %s121
      %p135 = scmp.eq.s32.totalorder %s24, 1
      %p136 = por %p134, %p135
      %p138 = scmp.ne.s32.totalorder %s121, %s137
      %p139 = scmp.eq.s32.totalorder %s24, 0
      %p140 = por %p138, %p139
      %s141 = ssub.s32 %s18, %s25
      %p142 = scmp.eq.s32.totalorder %s141, 0
      %s144 = sadd.s32 %s143, 1
      %s145 = scalar_select %p142, %s143, %s144
      %p148 = pneg %p142
      %p149 = scmp.eq.s32.totalorder %s18, 1
      %p150 = por %p148, %p149
      %p151 = scmp.ne.s32.totalorder %s143, %s146
      %p152 = scmp.eq.s32.totalorder %s18, 0
      %p153 = por %p151, %p152
      %p154 = scmp.ne.s32.totalorder %s143, %s146
      %p155 = scmp.eq.s32.totalorder %s23, 1
      %p156 = por %p154, %p155
      %p157 = scmp.ne.s32.totalorder %s146, %s147
      %p158 = scmp.eq.s32.totalorder %s23, 0
      %p159 = por %p157, %p158
      %p160 = scmp.ne.s32.totalorder %s146, %s147
      %p161 = scmp.eq.s32.totalorder %s24, 1
      %p162 = por %p160, %p161
      %p164 = scmp.ne.s32.totalorder %s147, %s163
      %p165 = scmp.eq.s32.totalorder %s24, 0
      %p166 = por %p164, %p165
      %p167 = scmp.le.s32.totalorder 1, %s18
      %p168 = scmp.lt.s32.totalorder %s18, 3
      %p169 = pnand %p167, %p168
      %p170 = pneg %p169
      // Predicated region
      $region9: #{tpu_custom_call.1} parent=5 // pred_check
        _
      $region10: #{tpu_custom_call.1} parent=5 // pred_check_branch
        %172 = sbr.rel (%p169) target = $region12
      $region11: #{tpu_custom_call.1} parent=5 // pred_region
        %s173 = ssub.s32 %s18, 1
        // Predicated region
        $region13: #{tpu_custom_call.1} parent=11 // pred_check
          %p174 = pneg %p65
        $region14: #{tpu_custom_call.1} parent=11 // pred_check_branch
          %176 = sbr.rel (%p174) target = $region16
        $region15: #{tpu_custom_call.1} parent=11 // pred_region
          _
        $region16: #{tpu_custom_call.1} parent=11 // pred_fallthru
          _
        // Predicated region
        $region17: #{tpu_custom_call.1} parent=11 // pred_check
          %p177 = pneg %p86
        $region18: #{tpu_custom_call.1} parent=11 // pred_check_branch
          %179 = sbr.rel (%p177) target = $region20
        $region19: #{tpu_custom_call.1} parent=11 // pred_region
          _
        $region20: #{tpu_custom_call.1} parent=11 // pred_fallthru
          _
        // Predicated region
        $region21: #{tpu_custom_call.1} parent=11 // pred_check
          %p180 = pneg %p107
        $region22: #{tpu_custom_call.1} parent=11 // pred_check_branch
          %182 = sbr.rel (%p180) target = $region24
        $region23: #{tpu_custom_call.1} parent=11 // pred_region
          _
        $region24: #{tpu_custom_call.1} parent=11 // pred_fallthru
          _
      $region12: #{tpu_custom_call.1} parent=5 // pred_fallthru
        _
      %p183 = scmp.lt.s32.totalorder %s18, 2
      // Predicated region
      $region25: #{tpu_custom_call.1} parent=5 // pred_check
        %p184 = pneg %p183
      $region26: #{tpu_custom_call.1} parent=5 // pred_check_branch
        %186 = sbr.rel (%p184) target = $region28
      $region27: #{tpu_custom_call.1} parent=5 // pred_region
        // Predicated region
        $region29: #{tpu_custom_call.1} parent=27 // pred_check
          %p187 = pneg %p38
        $region30: #{tpu_custom_call.1} parent=27 // pred_check_branch
          %189 = sbr.rel (%p187) target = $region32
        $region31: #{tpu_custom_call.1} parent=27 // pred_region
          %s190 = sand.u32 %s28, 1
          %s191 = scalar_lea.sflag [#allocation3], %s190
          %s192 = sand.u32 %s28, 1
          %s193 = smul.addr %s192, 64
          %s194 = scalar_lea.vmem [#allocation2], %s193
          %s196 = ssub.s32 1024, 1024
          %197 = vsyncadd %s191, %s196
          %s198 = smul.addr %s18, 8
          %s199 = smul.addr %s198, 128
          %s200 = scalar_lea.hbm %s0, %s199
          %s201 = sshll.u32 %s194, 4
          %s202 = int_to_ptr.vmem [resolvable:$true] %s201
          %207 = dma.hbm_to_vmem [thread:$0]  %s200, 1024, %s202, %s191, 256, 256, 16
        $region32: #{tpu_custom_call.1} parent=27 // pred_fallthru
          _
      $region28: #{tpu_custom_call.1} parent=5 // pred_fallthru
        _
      %p208 = scmp.le.s32.totalorder 1, %s18
      %p209 = scmp.lt.s32.totalorder %s18, 3
      %p210 = pnand %p208, %p209
      %p211 = pneg %p210
      // Predicated region
      $region33: #{tpu_custom_call.1} parent=5 // pred_check
        _
      $region34: #{tpu_custom_call.1} parent=5 // pred_check_branch
        %213 = sbr.rel (%p210) target = $region36
      $region35: #{tpu_custom_call.1} parent=5 // pred_region
        %s214 = ssub.s32 %s18, 1
        %s215 = sand.u32 %s31, 1
        %s216 = scalar_lea.sflag [#allocation3], %s215
        %s217 = sand.u32 %s31, 1
        %s218 = smul.addr %s217, 64
        %s219 = scalar_lea.vmem [#allocation2], %s218
        // Predicated region
        $region37: #{tpu_custom_call.1} parent=35 // pred_check
          %p220 = pneg %p44
        $region38: #{tpu_custom_call.1} parent=35 // pred_check_branch
          %222 = sbr.rel (%p220) target = $region40
        $region39: #{tpu_custom_call.1} parent=35 // pred_region
          %223 = dma.done %s216, 1024
        $region40: #{tpu_custom_call.1} parent=35 // pred_fallthru
          _
        %s224 = sand.u32 %s31, 1
        %s225 = scalar_lea.sflag [#allocation3], %s224
        %s226 = sand.u32 %s31, 1
        %s227 = smul.addr %s226, 64
        %s228 = scalar_lea.vmem [#allocation2], %s227
        %p229 = pneg %p44
        %p230 = pneg %p41
        %p231 = pneg %p65
        %p232 = pneg %p62
        %p233 = pneg %p86
        %p234 = pneg %p83
        %p235 = pneg %p107
        %p236 = pneg %p104
        %p237 = pneg %p133
        %p238 = pneg %p130
        %s239 = sand.u32 %s120, 1
        %s240 = scalar_lea.sflag [#allocation4], %s239
        %s241 = sand.u32 %s120, 1
        %s242 = smul.addr %s241, 256
        %s243 = scalar_lea.vmem [#allocation5], %s242
        %p244 = pneg %p159
        %p245 = pneg %p156
        %p246 = scmp.lt.s32.totalorder %s23, 1
        %s247 = scalar_select %p246, %s23, 1
        %s248 = smul.addr %s247, 16
        %s249 = smul.addr %s248, 8
        %s250 = scalar_lea.vmem %s5, %s249
        %p251 = scmp.lt.s32.totalorder %s23, 1
        %s252 = scalar_select %p251, %s23, 1
        %s253 = smul.addr %s252, 16
        %s254 = smul.addr %s253, 8
        %s255 = scalar_lea.vmem %s5, %s254
        %v256 = vld [vmem:[%s219] sm:$0xff]
        %v257 = vld [vmem:[%s219 + $0x8] sm:$0xff]
        %v258 = vld [vmem:[%s219 + $0x10] sm:$0xff]
        %v259 = vld [vmem:[%s219 + $0x18] sm:$0xff]
        %v260 = vld [vmem:[%s219 + $0x20] sm:$0xff]
        %v261 = vld [vmem:[%s219 + $0x28] sm:$0xff]
        %v262 = vld [vmem:[%s219 + $0x30] sm:$0xff]
        %v263 = vld [vmem:[%s219 + $0x38] sm:$0xff]
        %v264 = vld [vmem:[%s1] sm:$0xff]
        %v265 = vld [vmem:[%s1 + $0x8] sm:$0xff]
        %v268 = vcombine.low %v256, %v257
        %v269 = vcombine.high %v256, %v257
        %v271 = vunpack.c.l.s4 1966171168
        %v272 = vunpack.c.0.s8 %v271
        %v273 = vlaneseq
        %v274 = vshrl.u32 %v273, 7
        %v275 = vsub.s32 %v272, %v274
        %v276 = vrot.slane %v268, %v275
        %v278 = vunpack.c.l.s4 1966171168
        %v279 = vunpack.c.0.s8 %v278
        %v280 = vlaneseq
        %v281 = vshrl.u32 %v280, 7
        %v282 = vsub.s32 %v279, %v281
        %v283 = vrot.slane %v269, %v282
        %v284 = vcombine.high %v276, %v276
        %v285 = vcombine.high %v283, %v283
        %v287 = vunpack.c.l.s4 1966171168
        %v288 = vunpack.c.0.s8 %v287
        %v289 = vlaneseq
        %v290 = vshrl.u32 %v289, 7
        %v291 = vsub.s32 %v288, %v290
        %v292 = vrot.slane %v276, %v291
        %v294 = vunpack.c.l.s4 1966171168
        %v295 = vunpack.c.0.s8 %v294
        %v296 = vlaneseq
        %v297 = vshrl.u32 %v296, 7
        %v298 = vsub.s32 %v295, %v297
        %v299 = vrot.slane %v283, %v298
        %v301 = vunpack.c.l.s4 1966171168
        %v302 = vunpack.c.0.s8 %v301
        %v303 = vlaneseq
        %v304 = vshrl.u32 %v303, 7
        %v305 = vsub.s32 %v302, %v304
        %v306 = vrot.slane %v284, %v305
        %v308 = vunpack.c.l.s4 1966171168
        %v309 = vunpack.c.0.s8 %v308
        %v310 = vlaneseq
        %v311 = vshrl.u32 %v310, 7
        %v312 = vsub.s32 %v309, %v311
        %v313 = vrot.slane %v285, %v312
        %v314 = vcombine.high %v292, %v292
        %v315 = vcombine.high %v299, %v299
        %v316 = vcombine.high %v306, %v306
        %v317 = vcombine.high %v313, %v313
        %319 = vset.pattern.permute.xlu0 0
        %320 = vperm.xlu0 %319, %v264
        %v321 = vpop.permute.xlu0 %320
        %324 = vset.pattern.permute.xlu0 0
        %325 = vperm.xlu0 %324, %v265
        %v326 = vpop.permute.xlu0 %325
        %v328 = vlaneseq
        %v329 = vshrl.u32 %v328, 7
        %v330 = vsub.s32 0, %v329
        %v331 = vrot.slane %v292, %v330
        %v332 = vlaneseq
        %v333 = vshrl.u32 %v332, 7
        %v334 = vsub.s32 1, %v333
        %v335 = vrot.slane %v292, %v334
        %v336 = vlaneseq
        %v337 = vshrl.u32 %v336, 7
        %v338 = vsub.s32 0, %v337
        %v339 = vrot.slane %v306, %v338
        %v340 = vlaneseq
        %v341 = vshrl.u32 %v340, 7
        %v342 = vsub.s32 1, %v341
        %v343 = vrot.slane %v306, %v342
        %v344 = vlaneseq
        %v345 = vshrl.u32 %v344, 7
        %v346 = vsub.s32 0, %v345
        %v347 = vrot.slane %v314, %v346
        %v348 = vlaneseq
        %v349 = vshrl.u32 %v348, 7
        %v350 = vsub.s32 1, %v349
        %v351 = vrot.slane %v314, %v350
        %v352 = vlaneseq
        %v353 = vshrl.u32 %v352, 7
        %v354 = vsub.s32 0, %v353
        %v355 = vrot.slane %v316, %v354
        %v356 = vlaneseq
        %v357 = vshrl.u32 %v356, 7
        %v358 = vsub.s32 1, %v357
        %v359 = vrot.slane %v316, %v358
        %v360 = vlaneseq
        %v361 = vshrl.u32 %v360, 7
        %v362 = vsub.s32 0, %v361
        %v363 = vrot.slane %v299, %v362
        %v364 = vlaneseq
        %v365 = vshrl.u32 %v364, 7
        %v366 = vsub.s32 1, %v365
        %v367 = vrot.slane %v299, %v366
        %v368 = vlaneseq
        %v369 = vshrl.u32 %v368, 7
        %v370 = vsub.s32 0, %v369
        %v371 = vrot.slane %v313, %v370
        %v372 = vlaneseq
        %v373 = vshrl.u32 %v372, 7
        %v374 = vsub.s32 1, %v373
        %v375 = vrot.slane %v313, %v374
        %v376 = vlaneseq
        %v377 = vshrl.u32 %v376, 7
        %v378 = vsub.s32 0, %v377
        %v379 = vrot.slane %v315, %v378
        %v380 = vlaneseq
        %v381 = vshrl.u32 %v380, 7
        %v382 = vsub.s32 1, %v381
        %v383 = vrot.slane %v315, %v382
        %v384 = vlaneseq
        %v385 = vshrl.u32 %v384, 7
        %v386 = vsub.s32 0, %v385
        %v387 = vrot.slane %v317, %v386
        %v388 = vlaneseq
        %v389 = vshrl.u32 %v388, 7
        %v390 = vsub.s32 1, %v389
        %v391 = vrot.slane %v317, %v390
        %v408 = vmul.f32 %v321, %v331
        %v409 = vmul.f32 %v321, %v335
        %v410 = vmul.f32 %v326, %v331
        %v411 = vmul.f32 %v326, %v335
        %v412 = vmul.f32 %v321, %v339
        %v413 = vmul.f32 %v321, %v343
        %v414 = vmul.f32 %v326, %v339
        %v415 = vmul.f32 %v326, %v343
        %v416 = vmul.f32 %v321, %v347
        %v417 = vmul.f32 %v321, %v351
        %v418 = vmul.f32 %v326, %v347
        %v419 = vmul.f32 %v326, %v351
        %v420 = vmul.f32 %v321, %v355
        %v421 = vmul.f32 %v321, %v359
        %v422 = vmul.f32 %v326, %v355
        %v423 = vmul.f32 %v326, %v359
        %v424 = vmul.f32 %v321, %v363
        %v425 = vmul.f32 %v321, %v367
        %v426 = vmul.f32 %v326, %v363
        %v427 = vmul.f32 %v326, %v367
        %v428 = vmul.f32 %v321, %v371
        %v429 = vmul.f32 %v321, %v375
        %v430 = vmul.f32 %v326, %v371
        %v431 = vmul.f32 %v326, %v375
        %v432 = vmul.f32 %v321, %v379
        %v433 = vmul.f32 %v321, %v383
        %v434 = vmul.f32 %v326, %v379
        %v435 = vmul.f32 %v326, %v383
        %v436 = vmul.f32 %v321, %v387
        %v437 = vmul.f32 %v321, %v391
        %v438 = vmul.f32 %v326, %v387
        %v439 = vmul.f32 %v326, %v391
        %v442 = vcombine.low %v258, %v259
        %v443 = vcombine.high %v258, %v259
        %v445 = vunpack.c.l.s4 1966171168
        %v446 = vunpack.c.0.s8 %v445
        %v447 = vlaneseq
        %v448 = vshrl.u32 %v447, 7
        %v449 = vsub.s32 %v446, %v448
        %v450 = vrot.slane %v442, %v449
        %v452 = vunpack.c.l.s4 1966171168
        %v453 = vunpack.c.0.s8 %v452
        %v454 = vlaneseq
        %v455 = vshrl.u32 %v454, 7
        %v456 = vsub.s32 %v453, %v455
        %v457 = vrot.slane %v443, %v456
        %v458 = vcombine.high %v450, %v450
        %v459 = vcombine.high %v457, %v457
        %v461 = vunpack.c.l.s4 1966171168
        %v462 = vunpack.c.0.s8 %v461
        %v463 = vlaneseq
        %v464 = vshrl.u32 %v463, 7
        %v465 = vsub.s32 %v462, %v464
        %v466 = vrot.slane %v450, %v465
        %v468 = vunpack.c.l.s4 1966171168
        %v469 = vunpack.c.0.s8 %v468
        %v470 = vlaneseq
        %v471 = vshrl.u32 %v470, 7
        %v472 = vsub.s32 %v469, %v471
        %v473 = vrot.slane %v457, %v472
        %v475 = vunpack.c.l.s4 1966171168
        %v476 = vunpack.c.0.s8 %v475
        %v477 = vlaneseq
        %v478 = vshrl.u32 %v477, 7
        %v479 = vsub.s32 %v476, %v478
        %v480 = vrot.slane %v458, %v479
        %v482 = vunpack.c.l.s4 1966171168
        %v483 = vunpack.c.0.s8 %v482
        %v484 = vlaneseq
        %v485 = vshrl.u32 %v484, 7
        %v486 = vsub.s32 %v483, %v485
        %v487 = vrot.slane %v459, %v486
        %v488 = vcombine.high %v466, %v466
        %v489 = vcombine.high %v473, %v473
        %v490 = vcombine.high %v480, %v480
        %v491 = vcombine.high %v487, %v487
        %492 = vset.pattern.permute.xlu0 1
        %493 = vperm.xlu0 %492, %v264
        %v494 = vpop.permute.xlu0 %493
        %496 = vset.pattern.permute.xlu0 1
        %497 = vperm.xlu0 %496, %v265
        %v498 = vpop.permute.xlu0 %497
        %v500 = vlaneseq
        %v501 = vshrl.u32 %v500, 7
        %v502 = vsub.s32 0, %v501
        %v503 = vrot.slane %v466, %v502
        %v504 = vlaneseq
        %v505 = vshrl.u32 %v504, 7
        %v506 = vsub.s32 1, %v505
        %v507 = vrot.slane %v466, %v506
        %v508 = vlaneseq
        %v509 = vshrl.u32 %v508, 7
        %v510 = vsub.s32 0, %v509
        %v511 = vrot.slane %v480, %v510
        %v512 = vlaneseq
        %v513 = vshrl.u32 %v512, 7
        %v514 = vsub.s32 1, %v513
        %v515 = vrot.slane %v480, %v514
        %v516 = vlaneseq
        %v517 = vshrl.u32 %v516, 7
        %v518 = vsub.s32 0, %v517
        %v519 = vrot.slane %v488, %v518
        %v520 = vlaneseq
        %v521 = vshrl.u32 %v520, 7
        %v522 = vsub.s32 1, %v521
        %v523 = vrot.slane %v488, %v522
        %v524 = vlaneseq
        %v525 = vshrl.u32 %v524, 7
        %v526 = vsub.s32 0, %v525
        %v527 = vrot.slane %v490, %v526
        %v528 = vlaneseq
        %v529 = vshrl.u32 %v528, 7
        %v530 = vsub.s32 1, %v529
        %v531 = vrot.slane %v490, %v530
        %v532 = vlaneseq
        %v533 = vshrl.u32 %v532, 7
        %v534 = vsub.s32 0, %v533
        %v535 = vrot.slane %v473, %v534
        %v536 = vlaneseq
        %v537 = vshrl.u32 %v536, 7
        %v538 = vsub.s32 1, %v537
        %v539 = vrot.slane %v473, %v538
        %v540 = vlaneseq
        %v541 = vshrl.u32 %v540, 7
        %v542 = vsub.s32 0, %v541
        %v543 = vrot.slane %v487, %v542
        %v544 = vlaneseq
        %v545 = vshrl.u32 %v544, 7
        %v546 = vsub.s32 1, %v545
        %v547 = vrot.slane %v487, %v546
        %v548 = vlaneseq
        %v549 = vshrl.u32 %v548, 7
        %v550 = vsub.s32 0, %v549
        %v551 = vrot.slane %v489, %v550
        %v552 = vlaneseq
        %v553 = vshrl.u32 %v552, 7
        %v554 = vsub.s32 1, %v553
        %v555 = vrot.slane %v489, %v554
        %v556 = vlaneseq
        %v557 = vshrl.u32 %v556, 7
        %v558 = vsub.s32 0, %v557
        %v559 = vrot.slane %v491, %v558
        %v560 = vlaneseq
        %v561 = vshrl.u32 %v560, 7
        %v562 = vsub.s32 1, %v561
        %v563 = vrot.slane %v491, %v562
        %v580 = vmul.f32 %v494, %v503
        %v581 = vmul.f32 %v494, %v507
        %v582 = vmul.f32 %v498, %v503
        %v583 = vmul.f32 %v498, %v507
        %v584 = vmul.f32 %v494, %v511
        %v585 = vmul.f32 %v494, %v515
        %v586 = vmul.f32 %v498, %v511
        %v587 = vmul.f32 %v498, %v515
        %v588 = vmul.f32 %v494, %v519
        %v589 = vmul.f32 %v494, %v523
        %v590 = vmul.f32 %v498, %v519
        %v591 = vmul.f32 %v498, %v523
        %v592 = vmul.f32 %v494, %v527
        %v593 = vmul.f32 %v494, %v531
        %v594 = vmul.f32 %v498, %v527
        %v595 = vmul.f32 %v498, %v531
        %v596 = vmul.f32 %v494, %v535
        %v597 = vmul.f32 %v494, %v539
        %v598 = vmul.f32 %v498, %v535
        %v599 = vmul.f32 %v498, %v539
        %v600 = vmul.f32 %v494, %v543
        %v601 = vmul.f32 %v494, %v547
        %v602 = vmul.f32 %v498, %v543
        %v603 = vmul.f32 %v498, %v547
        %v604 = vmul.f32 %v494, %v551
        %v605 = vmul.f32 %v494, %v555
        %v606 = vmul.f32 %v498, %v551
        %v607 = vmul.f32 %v498, %v555
        %v608 = vmul.f32 %v494, %v559
        %v609 = vmul.f32 %v494, %v563
        %v610 = vmul.f32 %v498, %v559
        %v611 = vmul.f32 %v498, %v563
        %v612 = vadd.f32 %v408, %v580
        %v613 = vadd.f32 %v409, %v581
        %v614 = vadd.f32 %v410, %v582
        %v615 = vadd.f32 %v411, %v583
        %v616 = vadd.f32 %v412, %v584
        %v617 = vadd.f32 %v413, %v585
        %v618 = vadd.f32 %v414, %v586
        %v619 = vadd.f32 %v415, %v587
        %v620 = vadd.f32 %v416, %v588
        %v621 = vadd.f32 %v417, %v589
        %v622 = vadd.f32 %v418, %v590
        %v623 = vadd.f32 %v419, %v591
        %v624 = vadd.f32 %v420, %v592
        %v625 = vadd.f32 %v421, %v593
        %v626 = vadd.f32 %v422, %v594
        %v627 = vadd.f32 %v423, %v595
        %v628 = vadd.f32 %v424, %v596
        %v629 = vadd.f32 %v425, %v597
        %v630 = vadd.f32 %v426, %v598
        %v631 = vadd.f32 %v427, %v599
        %v632 = vadd.f32 %v428, %v600
        %v633 = vadd.f32 %v429, %v601
        %v634 = vadd.f32 %v430, %v602
        %v635 = vadd.f32 %v431, %v603
        %v636 = vadd.f32 %v432, %v604
        %v637 = vadd.f32 %v433, %v605
        %v638 = vadd.f32 %v434, %v606
        %v639 = vadd.f32 %v435, %v607
        %v640 = vadd.f32 %v436, %v608
        %v641 = vadd.f32 %v437, %v609
        %v642 = vadd.f32 %v438, %v610
        %v643 = vadd.f32 %v439, %v611
        %v646 = vcombine.low %v260, %v261
        %v647 = vcombine.high %v260, %v261
        %v649 = vunpack.c.l.s4 1966171168
        %v650 = vunpack.c.0.s8 %v649
        %v651 = vlaneseq
        %v652 = vshrl.u32 %v651, 7
        %v653 = vsub.s32 %v650, %v652
        %v654 = vrot.slane %v646, %v653
        %v656 = vunpack.c.l.s4 1966171168
        %v657 = vunpack.c.0.s8 %v656
        %v658 = vlaneseq
        %v659 = vshrl.u32 %v658, 7
        %v660 = vsub.s32 %v657, %v659
        %v661 = vrot.slane %v647, %v660
        %v662 = vcombine.high %v654, %v654
        %v663 = vcombine.high %v661, %v661
        %v665 = vunpack.c.l.s4 1966171168
        %v666 = vunpack.c.0.s8 %v665
        %v667 = vlaneseq
        %v668 = vshrl.u32 %v667, 7
        %v669 = vsub.s32 %v666, %v668
        %v670 = vrot.slane %v654, %v669
        %v672 = vunpack.c.l.s4 1966171168
        %v673 = vunpack.c.0.s8 %v672
        %v674 = vlaneseq
        %v675 = vshrl.u32 %v674, 7
        %v676 = vsub.s32 %v673, %v675
        %v677 = vrot.slane %v661, %v676
        %v679 = vunpack.c.l.s4 1966171168
        %v680 = vunpack.c.0.s8 %v679
        %v681 = vlaneseq
        %v682 = vshrl.u32 %v681, 7
        %v683 = vsub.s32 %v680, %v682
        %v684 = vrot.slane %v662, %v683
        %v686 = vunpack.c.l.s4 1966171168
        %v687 = vunpack.c.0.s8 %v686
        %v688 = vlaneseq
        %v689 = vshrl.u32 %v688, 7
        %v690 = vsub.s32 %v687, %v689
        %v691 = vrot.slane %v663, %v690
        %v692 = vcombine.high %v670, %v670
        %v693 = vcombine.high %v677, %v677
        %v694 = vcombine.high %v684, %v684
        %v695 = vcombine.high %v691, %v691
        %696 = vset.pattern.permute.xlu0 2
        %697 = vperm.xlu0 %696, %v264
        %v698 = vpop.permute.xlu0 %697
        %700 = vset.pattern.permute.xlu0 2
        %701 = vperm.xlu0 %700, %v265
        %v702 = vpop.permute.xlu0 %701
        %v704 = vlaneseq
        %v705 = vshrl.u32 %v704, 7
        %v706 = vsub.s32 0, %v705
        %v707 = vrot.slane %v670, %v706
        %v708 = vlaneseq
        %v709 = vshrl.u32 %v708, 7
        %v710 = vsub.s32 1, %v709
        %v711 = vrot.slane %v670, %v710
        %v712 = vlaneseq
        %v713 = vshrl.u32 %v712, 7
        %v714 = vsub.s32 0, %v713
        %v715 = vrot.slane %v684, %v714
        %v716 = vlaneseq
        %v717 = vshrl.u32 %v716, 7
        %v718 = vsub.s32 1, %v717
        %v719 = vrot.slane %v684, %v718
        %v720 = vlaneseq
        %v721 = vshrl.u32 %v720, 7
        %v722 = vsub.s32 0, %v721
        %v723 = vrot.slane %v692, %v722
        %v724 = vlaneseq
        %v725 = vshrl.u32 %v724, 7
        %v726 = vsub.s32 1, %v725
        %v727 = vrot.slane %v692, %v726
        %v728 = vlaneseq
        %v729 = vshrl.u32 %v728, 7
        %v730 = vsub.s32 0, %v729
        %v731 = vrot.slane %v694, %v730
        %v732 = vlaneseq
        %v733 = vshrl.u32 %v732, 7
        %v734 = vsub.s32 1, %v733
        %v735 = vrot.slane %v694, %v734
        %v736 = vlaneseq
        %v737 = vshrl.u32 %v736, 7
        %v738 = vsub.s32 0, %v737
        %v739 = vrot.slane %v677, %v738
        %v740 = vlaneseq
        %v741 = vshrl.u32 %v740, 7
        %v742 = vsub.s32 1, %v741
        %v743 = vrot.slane %v677, %v742
        %v744 = vlaneseq
        %v745 = vshrl.u32 %v744, 7
        %v746 = vsub.s32 0, %v745
        %v747 = vrot.slane %v691, %v746
        %v748 = vlaneseq
        %v749 = vshrl.u32 %v748, 7
        %v750 = vsub.s32 1, %v749
        %v751 = vrot.slane %v691, %v750
        %v752 = vlaneseq
        %v753 = vshrl.u32 %v752, 7
        %v754 = vsub.s32 0, %v753
        %v755 = vrot.slane %v693, %v754
        %v756 = vlaneseq
        %v757 = vshrl.u32 %v756, 7
        %v758 = vsub.s32 1, %v757
        %v759 = vrot.slane %v693, %v758
        %v760 = vlaneseq
        %v761 = vshrl.u32 %v760, 7
        %v762 = vsub.s32 0, %v761
        %v763 = vrot.slane %v695, %v762
        %v764 = vlaneseq
        %v765 = vshrl.u32 %v764, 7
        %v766 = vsub.s32 1, %v765
        %v767 = vrot.slane %v695, %v766
        %v784 = vmul.f32 %v698, %v707
        %v785 = vmul.f32 %v698, %v711
        %v786 = vmul.f32 %v702, %v707
        %v787 = vmul.f32 %v702, %v711
        %v788 = vmul.f32 %v698, %v715
        %v789 = vmul.f32 %v698, %v719
        %v790 = vmul.f32 %v702, %v715
        %v791 = vmul.f32 %v702, %v719
        %v792 = vmul.f32 %v698, %v723
        %v793 = vmul.f32 %v698, %v727
        %v794 = vmul.f32 %v702, %v723
        %v795 = vmul.f32 %v702, %v727
        %v796 = vmul.f32 %v698, %v731
        %v797 = vmul.f32 %v698, %v735
        %v798 = vmul.f32 %v702, %v731
        %v799 = vmul.f32 %v702, %v735
        %v800 = vmul.f32 %v698, %v739
        %v801 = vmul.f32 %v698, %v743
        %v802 = vmul.f32 %v702, %v739
        %v803 = vmul.f32 %v702, %v743
        %v804 = vmul.f32 %v698, %v747
        %v805 = vmul.f32 %v698, %v751
        %v806 = vmul.f32 %v702, %v747
        %v807 = vmul.f32 %v702, %v751
        %v808 = vmul.f32 %v698, %v755
        %v809 = vmul.f32 %v698, %v759
        %v810 = vmul.f32 %v702, %v755
        %v811 = vmul.f32 %v702, %v759
        %v812 = vmul.f32 %v698, %v763
        %v813 = vmul.f32 %v698, %v767
        %v814 = vmul.f32 %v702, %v763
        %v815 = vmul.f32 %v702, %v767
        %v816 = vadd.f32 %v612, %v784
        %v817 = vadd.f32 %v613, %v785
        %v818 = vadd.f32 %v614, %v786
        %v819 = vadd.f32 %v615, %v787
        %v820 = vadd.f32 %v616, %v788
        %v821 = vadd.f32 %v617, %v789
        %v822 = vadd.f32 %v618, %v790
        %v823 = vadd.f32 %v619, %v791
        %v824 = vadd.f32 %v620, %v792
        %v825 = vadd.f32 %v621, %v793
        %v826 = vadd.f32 %v622, %v794
        %v827 = vadd.f32 %v623, %v795
        %v828 = vadd.f32 %v624, %v796
        %v829 = vadd.f32 %v625, %v797
        %v830 = vadd.f32 %v626, %v798
        %v831 = vadd.f32 %v627, %v799
        %v832 = vadd.f32 %v628, %v800
        %v833 = vadd.f32 %v629, %v801
        %v834 = vadd.f32 %v630, %v802
        %v835 = vadd.f32 %v631, %v803
        %v836 = vadd.f32 %v632, %v804
        %v837 = vadd.f32 %v633, %v805
        %v838 = vadd.f32 %v634, %v806
        %v839 = vadd.f32 %v635, %v807
        %v840 = vadd.f32 %v636, %v808
        %v841 = vadd.f32 %v637, %v809
        %v842 = vadd.f32 %v638, %v810
        %v843 = vadd.f32 %v639, %v811
        %v844 = vadd.f32 %v640, %v812
        %v845 = vadd.f32 %v641, %v813
        %v846 = vadd.f32 %v642, %v814
        %v847 = vadd.f32 %v643, %v815
        %v850 = vcombine.low %v262, %v263
        %v851 = vcombine.high %v262, %v263
        %v853 = vunpack.c.l.s4 1966171168
        %v854 = vunpack.c.0.s8 %v853
        %v855 = vlaneseq
        %v856 = vshrl.u32 %v855, 7
        %v857 = vsub.s32 %v854, %v856
        %v858 = vrot.slane %v850, %v857
        %v860 = vunpack.c.l.s4 1966171168
        %v861 = vunpack.c.0.s8 %v860
        %v862 = vlaneseq
        %v863 = vshrl.u32 %v862, 7
        %v864 = vsub.s32 %v861, %v863
        %v865 = vrot.slane %v851, %v864
        %v866 = vcombine.high %v858, %v858
        %v867 = vcombine.high %v865, %v865
        %v869 = vunpack.c.l.s4 1966171168
        %v870 = vunpack.c.0.s8 %v869
        %v871 = vlaneseq
        %v872 = vshrl.u32 %v871, 7
        %v873 = vsub.s32 %v870, %v872
        %v874 = vrot.slane %v858, %v873
        %v876 = vunpack.c.l.s4 1966171168
        %v877 = vunpack.c.0.s8 %v876
        %v878 = vlaneseq
        %v879 = vshrl.u32 %v878, 7
        %v880 = vsub.s32 %v877, %v879
        %v881 = vrot.slane %v865, %v880
        %v883 = vunpack.c.l.s4 1966171168
        %v884 = vunpack.c.0.s8 %v883
        %v885 = vlaneseq
        %v886 = vshrl.u32 %v885, 7
        %v887 = vsub.s32 %v884, %v886
        %v888 = vrot.slane %v866, %v887
        %v890 = vunpack.c.l.s4 1966171168
        %v891 = vunpack.c.0.s8 %v890
        %v892 = vlaneseq
        %v893 = vshrl.u32 %v892, 7
        %v894 = vsub.s32 %v891, %v893
        %v895 = vrot.slane %v867, %v894
        %v896 = vcombine.high %v874, %v874
        %v897 = vcombine.high %v881, %v881
        %v898 = vcombine.high %v888, %v888
        %v899 = vcombine.high %v895, %v895
        %900 = vset.pattern.permute.xlu0 3
        %901 = vperm.xlu0 %900, %v264
        %v902 = vpop.permute.xlu0 %901
        %904 = vset.pattern.permute.xlu0 3
        %905 = vperm.xlu0 %904, %v265
        %v906 = vpop.permute.xlu0 %905
        %v908 = vlaneseq
        %v909 = vshrl.u32 %v908, 7
        %v910 = vsub.s32 0, %v909
        %v911 = vrot.slane %v874, %v910
        %v912 = vlaneseq
        %v913 = vshrl.u32 %v912, 7
        %v914 = vsub.s32 1, %v913
        %v915 = vrot.slane %v874, %v914
        %v916 = vlaneseq
        %v917 = vshrl.u32 %v916, 7
        %v918 = vsub.s32 0, %v917
        %v919 = vrot.slane %v888, %v918
        %v920 = vlaneseq
        %v921 = vshrl.u32 %v920, 7
        %v922 = vsub.s32 1, %v921
        %v923 = vrot.slane %v888, %v922
        %v924 = vlaneseq
        %v925 = vshrl.u32 %v924, 7
        %v926 = vsub.s32 0, %v925
        %v927 = vrot.slane %v896, %v926
        %v928 = vlaneseq
        %v929 = vshrl.u32 %v928, 7
        %v930 = vsub.s32 1, %v929
        %v931 = vrot.slane %v896, %v930
        %v932 = vlaneseq
        %v933 = vshrl.u32 %v932, 7
        %v934 = vsub.s32 0, %v933
        %v935 = vrot.slane %v898, %v934
        %v936 = vlaneseq
        %v937 = vshrl.u32 %v936, 7
        %v938 = vsub.s32 1, %v937
        %v939 = vrot.slane %v898, %v938
        %v940 = vlaneseq
        %v941 = vshrl.u32 %v940, 7
        %v942 = vsub.s32 0, %v941
        %v943 = vrot.slane %v881, %v942
        %v944 = vlaneseq
        %v945 = vshrl.u32 %v944, 7
        %v946 = vsub.s32 1, %v945
        %v947 = vrot.slane %v881, %v946
        %v948 = vlaneseq
        %v949 = vshrl.u32 %v948, 7
        %v950 = vsub.s32 0, %v949
        %v951 = vrot.slane %v895, %v950
        %v952 = vlaneseq
        %v953 = vshrl.u32 %v952, 7
        %v954 = vsub.s32 1, %v953
        %v955 = vrot.slane %v895, %v954
        %v956 = vlaneseq
        %v957 = vshrl.u32 %v956, 7
        %v958 = vsub.s32 0, %v957
        %v959 = vrot.slane %v897, %v958
        %v960 = vlaneseq
        %v961 = vshrl.u32 %v960, 7
        %v962 = vsub.s32 1, %v961
        %v963 = vrot.slane %v897, %v962
        %v964 = vlaneseq
        %v965 = vshrl.u32 %v964, 7
        %v966 = vsub.s32 0, %v965
        %v967 = vrot.slane %v899, %v966
        %v968 = vlaneseq
        %v969 = vshrl.u32 %v968, 7
        %v970 = vsub.s32 1, %v969
        %v971 = vrot.slane %v899, %v970
        %v988 = vmul.f32 %v902, %v911
        %v989 = vmul.f32 %v902, %v915
        %v990 = vmul.f32 %v906, %v911
        %v991 = vmul.f32 %v906, %v915
        %v992 = vmul.f32 %v902, %v919
        %v993 = vmul.f32 %v902, %v923
        %v994 = vmul.f32 %v906, %v919
        %v995 = vmul.f32 %v906, %v923
        %v996 = vmul.f32 %v902, %v927
        %v997 = vmul.f32 %v902, %v931
        %v998 = vmul.f32 %v906, %v927
        %v999 = vmul.f32 %v906, %v931
        %v1000 = vmul.f32 %v902, %v935
        %v1001 = vmul.f32 %v902, %v939
        %v1002 = vmul.f32 %v906, %v935
        %v1003 = vmul.f32 %v906, %v939
        %v1004 = vmul.f32 %v902, %v943
        %v1005 = vmul.f32 %v902, %v947
        %v1006 = vmul.f32 %v906, %v943
        %v1007 = vmul.f32 %v906, %v947
        %v1008 = vmul.f32 %v902, %v951
        %v1009 = vmul.f32 %v902, %v955
        %v1010 = vmul.f32 %v906, %v951
        %v1011 = vmul.f32 %v906, %v955
        %v1012 = vmul.f32 %v902, %v959
        %v1013 = vmul.f32 %v902, %v963
        %v1014 = vmul.f32 %v906, %v959
        %v1015 = vmul.f32 %v906, %v963
        %v1016 = vmul.f32 %v902, %v967
        %v1017 = vmul.f32 %v902, %v971
        %v1018 = vmul.f32 %v906, %v967
        %v1019 = vmul.f32 %v906, %v971
        %v1020 = vadd.f32 %v816, %v988
        %v1021 = vadd.f32 %v817, %v989
        %v1022 = vadd.f32 %v818, %v990
        %v1023 = vadd.f32 %v819, %v991
        %v1024 = vadd.f32 %v820, %v992
        %v1025 = vadd.f32 %v821, %v993
        %v1026 = vadd.f32 %v822, %v994
        %v1027 = vadd.f32 %v823, %v995
        %v1028 = vadd.f32 %v824, %v996
        %v1029 = vadd.f32 %v825, %v997
        %v1030 = vadd.f32 %v826, %v998
        %v1031 = vadd.f32 %v827, %v999
        %v1032 = vadd.f32 %v828, %v1000
        %v1033 = vadd.f32 %v829, %v1001
        %v1034 = vadd.f32 %v830, %v1002
        %v1035 = vadd.f32 %v831, %v1003
        %v1036 = vadd.f32 %v832, %v1004
        %v1037 = vadd.f32 %v833, %v1005
        %v1038 = vadd.f32 %v834, %v1006
        %v1039 = vadd.f32 %v835, %v1007
        %v1040 = vadd.f32 %v836, %v1008
        %v1041 = vadd.f32 %v837, %v1009
        %v1042 = vadd.f32 %v838, %v1010
        %v1043 = vadd.f32 %v839, %v1011
        %v1044 = vadd.f32 %v840, %v1012
        %v1045 = vadd.f32 %v841, %v1013
        %v1046 = vadd.f32 %v842, %v1014
        %v1047 = vadd.f32 %v843, %v1015
        %v1048 = vadd.f32 %v844, %v1016
        %v1049 = vadd.f32 %v845, %v1017
        %v1050 = vadd.f32 %v846, %v1018
        %v1051 = vadd.f32 %v847, %v1019
        %v1052 = vmax.f32 %v1020, %v1021
        %1053 = vmax.xlane.f32.xlu0 %v1052
        %v1054 = vpop.xlane.xlu0 %1053
        %v1055 = vmax.f32 %v1022, %v1023
        %1056 = vmax.xlane.f32.xlu0 %v1055
        %v1057 = vpop.xlane.xlu0 %1056
        %v1058 = vmax.f32 %v1024, %v1025
        %1059 = vmax.xlane.f32.xlu0 %v1058
        %v1060 = vpop.xlane.xlu0 %1059
        %v1061 = vmax.f32 %v1026, %v1027
        %1062 = vmax.xlane.f32.xlu0 %v1061
        %v1063 = vpop.xlane.xlu0 %1062
        %v1064 = vmax.f32 %v1028, %v1029
        %1065 = vmax.xlane.f32.xlu0 %v1064
        %v1066 = vpop.xlane.xlu0 %1065
        %v1067 = vmax.f32 %v1030, %v1031
        %1068 = vmax.xlane.f32.xlu0 %v1067
        %v1069 = vpop.xlane.xlu0 %1068
        %v1070 = vmax.f32 %v1032, %v1033
        %1071 = vmax.xlane.f32.xlu0 %v1070
        %v1072 = vpop.xlane.xlu0 %1071
        %v1073 = vmax.f32 %v1034, %v1035
        %1074 = vmax.xlane.f32.xlu0 %v1073
        %v1075 = vpop.xlane.xlu0 %1074
        %v1076 = vmax.f32 %v1036, %v1037
        %1077 = vmax.xlane.f32.xlu0 %v1076
        %v1078 = vpop.xlane.xlu0 %1077
        %v1079 = vmax.f32 %v1038, %v1039
        %1080 = vmax.xlane.f32.xlu0 %v1079
        %v1081 = vpop.xlane.xlu0 %1080
        %v1082 = vmax.f32 %v1040, %v1041
        %1083 = vmax.xlane.f32.xlu0 %v1082
        %v1084 = vpop.xlane.xlu0 %1083
        %v1085 = vmax.f32 %v1042, %v1043
        %1086 = vmax.xlane.f32.xlu0 %v1085
        %v1087 = vpop.xlane.xlu0 %1086
        %v1088 = vmax.f32 %v1044, %v1045
        %1089 = vmax.xlane.f32.xlu0 %v1088
        %v1090 = vpop.xlane.xlu0 %1089
        %v1091 = vmax.f32 %v1046, %v1047
        %1092 = vmax.xlane.f32.xlu0 %v1091
        %v1093 = vpop.xlane.xlu0 %1092
        %v1094 = vmax.f32 %v1048, %v1049
        %1095 = vmax.xlane.f32.xlu0 %v1094
        %v1096 = vpop.xlane.xlu0 %1095
        %v1097 = vmax.f32 %v1050, %v1051
        %1098 = vmax.xlane.f32.xlu0 %v1097
        %v1099 = vpop.xlane.xlu0 %1098
        %v1100 = vsub.f32 %v1020, %v1054
        %v1101 = vsub.f32 %v1021, %v1054
        %v1102 = vsub.f32 %v1022, %v1057
        %v1103 = vsub.f32 %v1023, %v1057
        %v1104 = vsub.f32 %v1024, %v1060
        %v1105 = vsub.f32 %v1025, %v1060
        %v1106 = vsub.f32 %v1026, %v1063
        %v1107 = vsub.f32 %v1027, %v1063
        %v1108 = vsub.f32 %v1028, %v1066
        %v1109 = vsub.f32 %v1029, %v1066
        %v1110 = vsub.f32 %v1030, %v1069
        %v1111 = vsub.f32 %v1031, %v1069
        %v1112 = vsub.f32 %v1032, %v1072
        %v1113 = vsub.f32 %v1033, %v1072
        %v1114 = vsub.f32 %v1034, %v1075
        %v1115 = vsub.f32 %v1035, %v1075
        %v1116 = vsub.f32 %v1036, %v1078
        %v1117 = vsub.f32 %v1037, %v1078
        %v1118 = vsub.f32 %v1038, %v1081
        %v1119 = vsub.f32 %v1039, %v1081
        %v1120 = vsub.f32 %v1040, %v1084
        %v1121 = vsub.f32 %v1041, %v1084
        %v1122 = vsub.f32 %v1042, %v1087
        %v1123 = vsub.f32 %v1043, %v1087
        %v1124 = vsub.f32 %v1044, %v1090
        %v1125 = vsub.f32 %v1045, %v1090
        %v1126 = vsub.f32 %v1046, %v1093
        %v1127 = vsub.f32 %v1047, %v1093
        %v1128 = vsub.f32 %v1048, %v1096
        %v1129 = vsub.f32 %v1049, %v1096
        %v1130 = vsub.f32 %v1050, %v1099
        %v1131 = vsub.f32 %v1051, %v1099
        %v1132 = vmul.f32 %v1100, 1.442695
        %v1133 = vpow.pop %v1132
        %v1134 = vmul.f32 %v1101, 1.442695
        %v1135 = vpow.pop %v1134
        %v1136 = vmul.f32 %v1102, 1.442695
        %v1137 = vpow.pop %v1136
        %v1138 = vmul.f32 %v1103, 1.442695
        %v1139 = vpow.pop %v1138
        %v1140 = vmul.f32 %v1104, 1.442695
        %v1141 = vpow.pop %v1140
        %v1142 = vmul.f32 %v1105, 1.442695
        %v1143 = vpow.pop %v1142
        %v1144 = vmul.f32 %v1106, 1.442695
        %v1145 = vpow.pop %v1144
        %v1146 = vmul.f32 %v1107, 1.442695
        %v1147 = vpow.pop %v1146
        %v1148 = vmul.f32 %v1108, 1.442695
        %v1149 = vpow.pop %v1148
        %v1150 = vmul.f32 %v1109, 1.442695
        %v1151 = vpow.pop %v1150
        %v1152 = vmul.f32 %v1110, 1.442695
        %v1153 = vpow.pop %v1152
        %v1154 = vmul.f32 %v1111, 1.442695
        %v1155 = vpow.pop %v1154
        %v1156 = vmul.f32 %v1112, 1.442695
        %v1157 = vpow.pop %v1156
        %v1158 = vmul.f32 %v1113, 1.442695
        %v1159 = vpow.pop %v1158
        %v1160 = vmul.f32 %v1114, 1.442695
        %v1161 = vpow.pop %v1160
        %v1162 = vmul.f32 %v1115, 1.442695
        %v1163 = vpow.pop %v1162
        %v1164 = vmul.f32 %v1116, 1.442695
        %v1165 = vpow.pop %v1164
        %v1166 = vmul.f32 %v1117, 1.442695
        %v1167 = vpow.pop %v1166
        %v1168 = vmul.f32 %v1118, 1.442695
        %v1169 = vpow.pop %v1168
        %v1170 = vmul.f32 %v1119, 1.442695
        %v1171 = vpow.pop %v1170
        %v1172 = vmul.f32 %v1120, 1.442695
        %v1173 = vpow.pop %v1172
        %v1174 = vmul.f32 %v1121, 1.442695
        %v1175 = vpow.pop %v1174
        %v1176 = vmul.f32 %v1122, 1.442695
        %v1177 = vpow.pop %v1176
        %v1178 = vmul.f32 %v1123, 1.442695
        %v1179 = vpow.pop %v1178
        %v1180 = vmul.f32 %v1124, 1.442695
        %v1181 = vpow.pop %v1180
        %v1182 = vmul.f32 %v1125, 1.442695
        %v1183 = vpow.pop %v1182
        %v1184 = vmul.f32 %v1126, 1.442695
        %v1185 = vpow.pop %v1184
        %v1186 = vmul.f32 %v1127, 1.442695
        %v1187 = vpow.pop %v1186
        %v1188 = vmul.f32 %v1128, 1.442695
        %v1189 = vpow.pop %v1188
        %v1190 = vmul.f32 %v1129, 1.442695
        %v1191 = vpow.pop %v1190
        %v1192 = vmul.f32 %v1130, 1.442695
        %v1193 = vpow.pop %v1192
        %v1194 = vmul.f32 %v1131, 1.442695
        %v1195 = vpow.pop %v1194
        %v1196 = vadd.f32 %v1133, %v1135
        %1197 = vadd.xlane.f32.xlu0 %v1196
        %v1198 = vpop.xlane.xlu0 %1197
        %v1199 = vadd.f32 %v1137, %v1139
        %1200 = vadd.xlane.f32.xlu0 %v1199
        %v1201 = vpop.xlane.xlu0 %1200
        %v1202 = vadd.f32 %v1141, %v1143
        %1203 = vadd.xlane.f32.xlu0 %v1202
        %v1204 = vpop.xlane.xlu0 %1203
        %v1205 = vadd.f32 %v1145, %v1147
        %1206 = vadd.xlane.f32.xlu0 %v1205
        %v1207 = vpop.xlane.xlu0 %1206
        %v1208 = vadd.f32 %v1149, %v1151
        %1209 = vadd.xlane.f32.xlu0 %v1208
        %v1210 = vpop.xlane.xlu0 %1209
        %v1211 = vadd.f32 %v1153, %v1155
        %1212 = vadd.xlane.f32.xlu0 %v1211
        %v1213 = vpop.xlane.xlu0 %1212
        %v1214 = vadd.f32 %v1157, %v1159
        %1215 = vadd.xlane.f32.xlu0 %v1214
        %v1216 = vpop.xlane.xlu0 %1215
        %v1217 = vadd.f32 %v1161, %v1163
        %1218 = vadd.xlane.f32.xlu0 %v1217
        %v1219 = vpop.xlane.xlu0 %1218
        %v1220 = vadd.f32 %v1165, %v1167
        %1221 = vadd.xlane.f32.xlu0 %v1220
        %v1222 = vpop.xlane.xlu0 %1221
        %v1223 = vadd.f32 %v1169, %v1171
        %1224 = vadd.xlane.f32.xlu0 %v1223
        %v1225 = vpop.xlane.xlu0 %1224
        %v1226 = vadd.f32 %v1173, %v1175
        %1227 = vadd.xlane.f32.xlu0 %v1226
        %v1228 = vpop.xlane.xlu0 %1227
        %v1229 = vadd.f32 %v1177, %v1179
        %1230 = vadd.xlane.f32.xlu0 %v1229
        %v1231 = vpop.xlane.xlu0 %1230
        %v1232 = vadd.f32 %v1181, %v1183
        %1233 = vadd.xlane.f32.xlu0 %v1232
        %v1234 = vpop.xlane.xlu0 %1233
        %v1235 = vadd.f32 %v1185, %v1187
        %1236 = vadd.xlane.f32.xlu0 %v1235
        %v1237 = vpop.xlane.xlu0 %1236
        %v1238 = vadd.f32 %v1189, %v1191
        %1239 = vadd.xlane.f32.xlu0 %v1238
        %v1240 = vpop.xlane.xlu0 %1239
        %v1241 = vadd.f32 %v1193, %v1195
        %1242 = vadd.xlane.f32.xlu0 %v1241
        %v1243 = vpop.xlane.xlu0 %1242
        %v1244 = vrcp.pop %v1198
        %v1245 = vrcp.pop %v1201
        %v1246 = vrcp.pop %v1204
        %v1247 = vrcp.pop %v1207
        %v1248 = vrcp.pop %v1210
        %v1249 = vrcp.pop %v1213
        %v1250 = vrcp.pop %v1216
        %v1251 = vrcp.pop %v1219
        %v1252 = vrcp.pop %v1222
        %v1253 = vrcp.pop %v1225
        %v1254 = vrcp.pop %v1228
        %v1255 = vrcp.pop %v1231
        %v1256 = vrcp.pop %v1234
        %v1257 = vrcp.pop %v1237
        %v1258 = vrcp.pop %v1240
        %v1259 = vrcp.pop %v1243
        %v1260 = vmul.f32 %v1133, %v1244
        %v1261 = vmul.f32 %v1135, %v1244
        %v1262 = vmul.f32 %v1137, %v1245
        %v1263 = vmul.f32 %v1139, %v1245
        %v1264 = vmul.f32 %v1141, %v1246
        %v1265 = vmul.f32 %v1143, %v1246
        %v1266 = vmul.f32 %v1145, %v1247
        %v1267 = vmul.f32 %v1147, %v1247
        %v1268 = vmul.f32 %v1149, %v1248
        %v1269 = vmul.f32 %v1151, %v1248
        %v1270 = vmul.f32 %v1153, %v1249
        %v1271 = vmul.f32 %v1155, %v1249
        %v1272 = vmul.f32 %v1157, %v1250
        %v1273 = vmul.f32 %v1159, %v1250
        %v1274 = vmul.f32 %v1161, %v1251
        %v1275 = vmul.f32 %v1163, %v1251
        %v1276 = vmul.f32 %v1165, %v1252
        %v1277 = vmul.f32 %v1167, %v1252
        %v1278 = vmul.f32 %v1169, %v1253
        %v1279 = vmul.f32 %v1171, %v1253
        %v1280 = vmul.f32 %v1173, %v1254
        %v1281 = vmul.f32 %v1175, %v1254
        %v1282 = vmul.f32 %v1177, %v1255
        %v1283 = vmul.f32 %v1179, %v1255
        %v1284 = vmul.f32 %v1181, %v1256
        %v1285 = vmul.f32 %v1183, %v1256
        %v1286 = vmul.f32 %v1185, %v1257
        %v1287 = vmul.f32 %v1187, %v1257
        %v1288 = vmul.f32 %v1189, %v1258
        %v1289 = vmul.f32 %v1191, %v1258
        %v1290 = vmul.f32 %v1193, %v1259
        %v1291 = vmul.f32 %v1195, %v1259
        %1292 = vst [vmem:[%s243] sm:$0xff] %v1260
        %1293 = vst [vmem:[%s243 + $0x8] sm:$0xff] %v1261
        %1294 = vst [vmem:[%s243 + $0x10] sm:$0xff] %v1262
        %1295 = vst [vmem:[%s243 + $0x18] sm:$0xff] %v1263
        %1296 = vst [vmem:[%s243 + $0x20] sm:$0xff] %v1264
        %1297 = vst [vmem:[%s243 + $0x28] sm:$0xff] %v1265
        %1298 = vst [vmem:[%s243 + $0x30] sm:$0xff] %v1266
        %1299 = vst [vmem:[%s243 + $0x38] sm:$0xff] %v1267
        %1300 = vst [vmem:[%s243 + $0x40] sm:$0xff] %v1268
        %1301 = vst [vmem:[%s243 + $0x48] sm:$0xff] %v1269
        %1302 = vst [vmem:[%s243 + $0x50] sm:$0xff] %v1270
        %1303 = vst [vmem:[%s243 + $0x58] sm:$0xff] %v1271
        %1304 = vst [vmem:[%s243 + $0x60] sm:$0xff] %v1272
        %1305 = vst [vmem:[%s243 + $0x68] sm:$0xff] %v1273
        %1306 = vst [vmem:[%s243 + $0x70] sm:$0xff] %v1274
        %1307 = vst [vmem:[%s243 + $0x78] sm:$0xff] %v1275
        %1308 = vst [vmem:[%s243 + $0x80] sm:$0xff] %v1276
        %1309 = vst [vmem:[%s243 + $0x88] sm:$0xff] %v1277
        %1310 = vst [vmem:[%s243 + $0x90] sm:$0xff] %v1278
        %1311 = vst [vmem:[%s243 + $0x98] sm:$0xff] %v1279
        %1312 = vst [vmem:[%s243 + $0xa0] sm:$0xff] %v1280
        %1313 = vst [vmem:[%s243 + $0xa8] sm:$0xff] %v1281
        %1314 = vst [vmem:[%s243 + $0xb0] sm:$0xff] %v1282
        %1315 = vst [vmem:[%s243 + $0xb8] sm:$0xff] %v1283
        %1316 = vst [vmem:[%s243 + $0xc0] sm:$0xff] %v1284
        %1317 = vst [vmem:[%s243 + $0xc8] sm:$0xff] %v1285
        %1318 = vst [vmem:[%s243 + $0xd0] sm:$0xff] %v1286
        %1319 = vst [vmem:[%s243 + $0xd8] sm:$0xff] %v1287
        %1320 = vst [vmem:[%s243 + $0xe0] sm:$0xff] %v1288
        %1321 = vst [vmem:[%s243 + $0xe8] sm:$0xff] %v1289
        %1322 = vst [vmem:[%s243 + $0xf0] sm:$0xff] %v1290
        %1323 = vst [vmem:[%s243 + $0xf8] sm:$0xff] %v1291
        %v1324 = vld [vmem:[%s2] sm:$0x3]
        %v1325 = vld [vmem:[%s3] sm:$0x3]
        %v1327 = vlaneseq
        %v1328 = vshrl.u32 %v1327, 7
        %v1329 = vsub.s32 0, %v1328
        %v1330 = vrot.slane %v1324, %v1329
        %v1331 = vlaneseq
        %v1332 = vshrl.u32 %v1331, 7
        %v1333 = vsub.s32 1, %v1332
        %v1334 = vrot.slane %v1324, %v1333
        %v1337 = vmul.f32 %v1133, %v1330
        %v1338 = vmul.f32 %v1135, %v1334
        %v1339 = vmul.f32 %v1137, %v1330
        %v1340 = vmul.f32 %v1139, %v1334
        %v1341 = vmul.f32 %v1141, %v1330
        %v1342 = vmul.f32 %v1143, %v1334
        %v1343 = vmul.f32 %v1145, %v1330
        %v1344 = vmul.f32 %v1147, %v1334
        %v1345 = vmul.f32 %v1149, %v1330
        %v1346 = vmul.f32 %v1151, %v1334
        %v1347 = vmul.f32 %v1153, %v1330
        %v1348 = vmul.f32 %v1155, %v1334
        %v1349 = vmul.f32 %v1157, %v1330
        %v1350 = vmul.f32 %v1159, %v1334
        %v1351 = vmul.f32 %v1161, %v1330
        %v1352 = vmul.f32 %v1163, %v1334
        %v1353 = vmul.f32 %v1165, %v1330
        %v1354 = vmul.f32 %v1167, %v1334
        %v1355 = vmul.f32 %v1169, %v1330
        %v1356 = vmul.f32 %v1171, %v1334
        %v1357 = vmul.f32 %v1173, %v1330
        %v1358 = vmul.f32 %v1175, %v1334
        %v1359 = vmul.f32 %v1177, %v1330
        %v1360 = vmul.f32 %v1179, %v1334
        %v1361 = vmul.f32 %v1181, %v1330
        %v1362 = vmul.f32 %v1183, %v1334
        %v1363 = vmul.f32 %v1185, %v1330
        %v1364 = vmul.f32 %v1187, %v1334
        %v1365 = vmul.f32 %v1189, %v1330
        %v1366 = vmul.f32 %v1191, %v1334
        %v1367 = vmul.f32 %v1193, %v1330
        %v1368 = vmul.f32 %v1195, %v1334
        %v1369 = vadd.f32 %v1337, %v1338
        %1370 = vadd.xlane.f32.xlu0 %v1369
        %v1371 = vpop.xlane.xlu0 %1370
        %v1372 = vadd.f32 %v1339, %v1340
        %1373 = vadd.xlane.f32.xlu0 %v1372
        %v1374 = vpop.xlane.xlu0 %1373
        %v1375 = vadd.f32 %v1341, %v1342
        %1376 = vadd.xlane.f32.xlu0 %v1375
        %v1377 = vpop.xlane.xlu0 %1376
        %v1378 = vadd.f32 %v1343, %v1344
        %1379 = vadd.xlane.f32.xlu0 %v1378
        %v1380 = vpop.xlane.xlu0 %1379
        %v1381 = vadd.f32 %v1345, %v1346
        %1382 = vadd.xlane.f32.xlu0 %v1381
        %v1383 = vpop.xlane.xlu0 %1382
        %v1384 = vadd.f32 %v1347, %v1348
        %1385 = vadd.xlane.f32.xlu0 %v1384
        %v1386 = vpop.xlane.xlu0 %1385
        %v1387 = vadd.f32 %v1349, %v1350
        %1388 = vadd.xlane.f32.xlu0 %v1387
        %v1389 = vpop.xlane.xlu0 %1388
        %v1390 = vadd.f32 %v1351, %v1352
        %1391 = vadd.xlane.f32.xlu0 %v1390
        %v1392 = vpop.xlane.xlu0 %1391
        %v1393 = vadd.f32 %v1353, %v1354
        %1394 = vadd.xlane.f32.xlu0 %v1393
        %v1395 = vpop.xlane.xlu0 %1394
        %v1396 = vadd.f32 %v1355, %v1356
        %1397 = vadd.xlane.f32.xlu0 %v1396
        %v1398 = vpop.xlane.xlu0 %1397
        %v1399 = vadd.f32 %v1357, %v1358
        %1400 = vadd.xlane.f32.xlu0 %v1399
        %v1401 = vpop.xlane.xlu0 %1400
        %v1402 = vadd.f32 %v1359, %v1360
        %1403 = vadd.xlane.f32.xlu0 %v1402
        %v1404 = vpop.xlane.xlu0 %1403
        %v1405 = vadd.f32 %v1361, %v1362
        %1406 = vadd.xlane.f32.xlu0 %v1405
        %v1407 = vpop.xlane.xlu0 %1406
        %v1408 = vadd.f32 %v1363, %v1364
        %1409 = vadd.xlane.f32.xlu0 %v1408
        %v1410 = vpop.xlane.xlu0 %1409
        %v1411 = vadd.f32 %v1365, %v1366
        %1412 = vadd.xlane.f32.xlu0 %v1411
        %v1413 = vpop.xlane.xlu0 %1412
        %v1414 = vadd.f32 %v1367, %v1368
        %1415 = vadd.xlane.f32.xlu0 %v1414
        %v1416 = vpop.xlane.xlu0 %1415
        %v1417 = vmul.f32 %v1371, %v1244
        %v1418 = vmul.f32 %v1374, %v1245
        %v1419 = vmul.f32 %v1377, %v1246
        %v1420 = vmul.f32 %v1380, %v1247
        %v1421 = vmul.f32 %v1383, %v1248
        %v1422 = vmul.f32 %v1386, %v1249
        %v1423 = vmul.f32 %v1389, %v1250
        %v1424 = vmul.f32 %v1392, %v1251
        %v1425 = vmul.f32 %v1395, %v1252
        %v1426 = vmul.f32 %v1398, %v1253
        %v1427 = vmul.f32 %v1401, %v1254
        %v1428 = vmul.f32 %v1404, %v1255
        %v1429 = vmul.f32 %v1407, %v1256
        %v1430 = vmul.f32 %v1410, %v1257
        %v1431 = vmul.f32 %v1413, %v1258
        %v1432 = vmul.f32 %v1416, %v1259
        %v1434 = vlaneseq
        %v1435 = vshrl.u32 %v1434, 7
        %v1436 = vsub.s32 0, %v1435
        %v1437 = vrot.slane %v1325, %v1436
        %v1438 = vlaneseq
        %v1439 = vshrl.u32 %v1438, 7
        %v1440 = vsub.s32 1, %v1439
        %v1441 = vrot.slane %v1325, %v1440
        %v1444 = vmul.f32 %v1133, %v1437
        %v1445 = vmul.f32 %v1135, %v1441
        %v1446 = vmul.f32 %v1137, %v1437
        %v1447 = vmul.f32 %v1139, %v1441
        %v1448 = vmul.f32 %v1141, %v1437
        %v1449 = vmul.f32 %v1143, %v1441
        %v1450 = vmul.f32 %v1145, %v1437
        %v1451 = vmul.f32 %v1147, %v1441
        %v1452 = vmul.f32 %v1149, %v1437
        %v1453 = vmul.f32 %v1151, %v1441
        %v1454 = vmul.f32 %v1153, %v1437
        %v1455 = vmul.f32 %v1155, %v1441
        %v1456 = vmul.f32 %v1157, %v1437
        %v1457 = vmul.f32 %v1159, %v1441
        %v1458 = vmul.f32 %v1161, %v1437
        %v1459 = vmul.f32 %v1163, %v1441
        %v1460 = vmul.f32 %v1165, %v1437
        %v1461 = vmul.f32 %v1167, %v1441
        %v1462 = vmul.f32 %v1169, %v1437
        %v1463 = vmul.f32 %v1171, %v1441
        %v1464 = vmul.f32 %v1173, %v1437
        %v1465 = vmul.f32 %v1175, %v1441
        %v1466 = vmul.f32 %v1177, %v1437
        %v1467 = vmul.f32 %v1179, %v1441
        %v1468 = vmul.f32 %v1181, %v1437
        %v1469 = vmul.f32 %v1183, %v1441
        %v1470 = vmul.f32 %v1185, %v1437
        %v1471 = vmul.f32 %v1187, %v1441
        %v1472 = vmul.f32 %v1189, %v1437
        %v1473 = vmul.f32 %v1191, %v1441
        %v1474 = vmul.f32 %v1193, %v1437
        %v1475 = vmul.f32 %v1195, %v1441
        %v1476 = vadd.f32 %v1444, %v1445
        %1477 = vadd.xlane.f32.xlu0 %v1476
        %v1478 = vpop.xlane.xlu0 %1477
        %v1479 = vadd.f32 %v1446, %v1447
        %1480 = vadd.xlane.f32.xlu0 %v1479
        %v1481 = vpop.xlane.xlu0 %1480
        %v1482 = vadd.f32 %v1448, %v1449
        %1483 = vadd.xlane.f32.xlu0 %v1482
        %v1484 = vpop.xlane.xlu0 %1483
        %v1485 = vadd.f32 %v1450, %v1451
        %1486 = vadd.xlane.f32.xlu0 %v1485
        %v1487 = vpop.xlane.xlu0 %1486
        %v1488 = vadd.f32 %v1452, %v1453
        %1489 = vadd.xlane.f32.xlu0 %v1488
        %v1490 = vpop.xlane.xlu0 %1489
        %v1491 = vadd.f32 %v1454, %v1455
        %1492 = vadd.xlane.f32.xlu0 %v1491
        %v1493 = vpop.xlane.xlu0 %1492
        %v1494 = vadd.f32 %v1456, %v1457
        %1495 = vadd.xlane.f32.xlu0 %v1494
        %v1496 = vpop.xlane.xlu0 %1495
        %v1497 = vadd.f32 %v1458, %v1459
        %1498 = vadd.xlane.f32.xlu0 %v1497
        %v1499 = vpop.xlane.xlu0 %1498
        %v1500 = vadd.f32 %v1460, %v1461
        %1501 = vadd.xlane.f32.xlu0 %v1500
        %v1502 = vpop.xlane.xlu0 %1501
        %v1503 = vadd.f32 %v1462, %v1463
        %1504 = vadd.xlane.f32.xlu0 %v1503
        %v1505 = vpop.xlane.xlu0 %1504
        %v1506 = vadd.f32 %v1464, %v1465
        %1507 = vadd.xlane.f32.xlu0 %v1506
        %v1508 = vpop.xlane.xlu0 %1507
        %v1509 = vadd.f32 %v1466, %v1467
        %1510 = vadd.xlane.f32.xlu0 %v1509
        %v1511 = vpop.xlane.xlu0 %1510
        %v1512 = vadd.f32 %v1468, %v1469
        %1513 = vadd.xlane.f32.xlu0 %v1512
        %v1514 = vpop.xlane.xlu0 %1513
        %v1515 = vadd.f32 %v1470, %v1471
        %1516 = vadd.xlane.f32.xlu0 %v1515
        %v1517 = vpop.xlane.xlu0 %1516
        %v1518 = vadd.f32 %v1472, %v1473
        %1519 = vadd.xlane.f32.xlu0 %v1518
        %v1520 = vpop.xlane.xlu0 %1519
        %v1521 = vadd.f32 %v1474, %v1475
        %1522 = vadd.xlane.f32.xlu0 %v1521
        %v1523 = vpop.xlane.xlu0 %1522
        %v1524 = vmul.f32 %v1478, %v1244
        %v1525 = vmul.f32 %v1481, %v1245
        %v1526 = vmul.f32 %v1484, %v1246
        %v1527 = vmul.f32 %v1487, %v1247
        %v1528 = vmul.f32 %v1490, %v1248
        %v1529 = vmul.f32 %v1493, %v1249
        %v1530 = vmul.f32 %v1496, %v1250
        %v1531 = vmul.f32 %v1499, %v1251
        %v1532 = vmul.f32 %v1502, %v1252
        %v1533 = vmul.f32 %v1505, %v1253
        %v1534 = vmul.f32 %v1508, %v1254
        %v1535 = vmul.f32 %v1511, %v1255
        %v1536 = vmul.f32 %v1514, %v1256
        %v1537 = vmul.f32 %v1517, %v1257
        %v1538 = vmul.f32 %v1520, %v1258
        %v1539 = vmul.f32 %v1523, %v1259
        %vm1540 = vcmask 7168
        %v1541 = vsel %vm1540, %v1417, %v1524
        %v1542 = vsel %vm1540, %v1418, %v1525
        %v1543 = vsel %vm1540, %v1419, %v1526
        %v1544 = vsel %vm1540, %v1420, %v1527
        %v1545 = vsel %vm1540, %v1421, %v1528
        %v1546 = vsel %vm1540, %v1422, %v1529
        %v1547 = vsel %vm1540, %v1423, %v1530
        %v1548 = vsel %vm1540, %v1424, %v1531
        %v1549 = vsel %vm1540, %v1425, %v1532
        %v1550 = vsel %vm1540, %v1426, %v1533
        %v1551 = vsel %vm1540, %v1427, %v1534
        %v1552 = vsel %vm1540, %v1428, %v1535
        %v1553 = vsel %vm1540, %v1429, %v1536
        %v1554 = vsel %vm1540, %v1430, %v1537
        %v1555 = vsel %vm1540, %v1431, %v1538
        %v1556 = vsel %vm1540, %v1432, %v1539
        %vm1557 = vcmask 15360
        %1558 = vst.msk [vmem:[%s255] sm:$0xff] %vm1557, %v1541
        %1559 = vst.msk [vmem:[%s255 + $0x8] sm:$0xff] %vm1557, %v1542
        %1560 = vst.msk [vmem:[%s255 + $0x10] sm:$0xff] %vm1557, %v1543
        %1561 = vst.msk [vmem:[%s255 + $0x18] sm:$0xff] %vm1557, %v1544
        %1562 = vst.msk [vmem:[%s255 + $0x20] sm:$0xff] %vm1557, %v1545
        %1563 = vst.msk [vmem:[%s255 + $0x28] sm:$0xff] %vm1557, %v1546
        %1564 = vst.msk [vmem:[%s255 + $0x30] sm:$0xff] %vm1557, %v1547
        %1565 = vst.msk [vmem:[%s255 + $0x38] sm:$0xff] %vm1557, %v1548
        %1566 = vst.msk [vmem:[%s255 + $0x40] sm:$0xff] %vm1557, %v1549
        %1567 = vst.msk [vmem:[%s255 + $0x48] sm:$0xff] %vm1557, %v1550
        %1568 = vst.msk [vmem:[%s255 + $0x50] sm:$0xff] %vm1557, %v1551
        %1569 = vst.msk [vmem:[%s255 + $0x58] sm:$0xff] %vm1557, %v1552
        %1570 = vst.msk [vmem:[%s255 + $0x60] sm:$0xff] %vm1557, %v1553
        %1571 = vst.msk [vmem:[%s255 + $0x68] sm:$0xff] %vm1557, %v1554
        %1572 = vst.msk [vmem:[%s255 + $0x70] sm:$0xff] %vm1557, %v1555
        %1573 = vst.msk [vmem:[%s255 + $0x78] sm:$0xff] %vm1557, %v1556
        %s1574 = sand.u32 %s120, 1
        %s1575 = scalar_lea.sflag [#allocation4], %s1574
        %s1576 = sand.u32 %s120, 1
        %s1577 = smul.addr %s1576, 256
        %s1578 = scalar_lea.vmem [#allocation5], %s1577
        %p1579 = scmp.lt.s32.totalorder %s23, 1
        %s1580 = scalar_select %p1579, %s23, 1
        %s1581 = smul.addr %s1580, 16
        %s1582 = smul.addr %s1581, 8
        %s1583 = scalar_lea.vmem %s5, %s1582
        // Predicated region
        $region41: #{tpu_custom_call.1} parent=35 // pred_check
          %p1584 = pneg %p130
        $region42: #{tpu_custom_call.1} parent=35 // pred_check_branch
          %1586 = sbr.rel (%p1584) target = $region44
        $region43: #{tpu_custom_call.1} parent=35 // pred_region
          %s1588 = ssub.s32 4096, 4096
          %1589 = vsyncadd %s1575, %s1588
          %s1590 = smul.addr %s23, 32
          %s1591 = smul.addr %s1590, 128
          %s1592 = scalar_lea.hbm %s4, %s1591
          %s1593 = sshll.u32 %s1578, 4
          %s1594 = int_to_ptr.vmem [resolvable:$true] %s1593
          %1599 = dma.vmem_to_hbm [thread:$0]  %s1594, 4096, %s1592, %s1575, 256, 256, 16
        $region44: #{tpu_custom_call.1} parent=35 // pred_fallthru
          _
        // Predicated region
        $region45: #{tpu_custom_call.1} parent=35 // pred_check
          %p1600 = pneg %p156
        $region46: #{tpu_custom_call.1} parent=35 // pred_check_branch
          %1602 = sbr.rel (%p1600) target = $region48
        $region47: #{tpu_custom_call.1} parent=35 // pred_region
          _
        $region48: #{tpu_custom_call.1} parent=35 // pred_fallthru
          _
      $region36: #{tpu_custom_call.1} parent=5 // pred_fallthru
        _
      %p1603 = scmp.le.s32.totalorder 2, %s18
      // Predicated region
      $region49: #{tpu_custom_call.1} parent=5 // pred_check
        %p1604 = pneg %p1603
      $region50: #{tpu_custom_call.1} parent=5 // pred_check_branch
        %1606 = sbr.rel (%p1604) target = $region52
      $region51: #{tpu_custom_call.1} parent=5 // pred_region
        %s1607 = ssub.s32 %s18, 2
        // Predicated region
        $region53: #{tpu_custom_call.1} parent=51 // pred_check
          %p1608 = pneg %p136
        $region54: #{tpu_custom_call.1} parent=51 // pred_check_branch
          %1610 = sbr.rel (%p1608) target = $region56
        $region55: #{tpu_custom_call.1} parent=51 // pred_region
          %s1611 = sand.u32 %s121, 1
          %s1612 = scalar_lea.sflag [#allocation4], %s1611
          %s1613 = sand.u32 %s121, 1
          %s1614 = smul.addr %s1613, 256
          %s1615 = scalar_lea.vmem [#allocation5], %s1614
          %1616 = dma.done %s1612, 4096
        $region56: #{tpu_custom_call.1} parent=51 // pred_fallthru
          _
        // Predicated region
        $region57: #{tpu_custom_call.1} parent=51 // pred_check
          %p1617 = pneg %p162
        $region58: #{tpu_custom_call.1} parent=51 // pred_check_branch
          %1619 = sbr.rel (%p1617) target = $region60
        $region59: #{tpu_custom_call.1} parent=51 // pred_region
          %p1620 = scmp.lt.s32.totalorder %s24, 1
          %s1621 = scalar_select %p1620, %s24, 1
          %s1622 = smul.addr %s1621, 16
          %s1623 = smul.addr %s1622, 8
          %s1624 = scalar_lea.vmem %s5, %s1623
        $region60: #{tpu_custom_call.1} parent=51 // pred_fallthru
          _
      $region52: #{tpu_custom_call.1} parent=5 // pred_fallthru
        _
    $region6: #{tpu_custom_call.1} parent=1 // loop_footer
      %s22 = sadd.s32 1, %s18
    $region7: #{tpu_custom_call.1} parent=1 // loop_footer_branch
      %17 = sbr.rel target = $region3
    $region8: #{tpu_custom_call.1} parent=1 // loop_exit
      _
    %1625 = vsyncpa [#allocation3], 1
    %s1626 = scalar_lea.sflag [#allocation3], 1
    %1627 = vsyncpa %s1626, 1
    %1628 = vsyncpa [#allocation4], 1
    %s1629 = scalar_lea.sflag [#allocation4], 1
    %1630 = vsyncpa %s1629, 1

</llo_original>
